<compile_context>
chip_gen: v5e
topology: v5e:2x2
jax: 0.10.0
libtpu: 0.0.40
codegen_flags: <defaults>
</compile_context>

<pallas_src>
import functools
import jax
import jax.numpy as jnp
from jax.experimental import pallas as pl
from jax.experimental.pallas import tpu as pltpu


# ------------------------------ Pallas kernel ------------------------------

def _block_kernel(x_ref, wq_ref, wk_ref, wv_ref, w0_ref, g_ref, b_ref, o_ref,
                  *, batch_block, seq_len, heads, dim, eps):
    BB, T, H, D = batch_block, seq_len, heads, dim
    M, Dp = x_ref.shape                      # (BB*T, 128): lane-dense block

    x = x_ref[...]                           # (M, Dp) f32 (residual / LN path)
    xb = x.astype(jnp.bfloat16)
    xg = jnp.broadcast_to(xb[None], (H, M, Dp))      # head-batched MXU LHS

    wq, wk, wv, w0 = wq_ref[...], wk_ref[...], wv_ref[...], w0_ref[...]  # (H,dh,Dp) bf16

    # QKV projections: one head-batched MXU pass each, M = BB*T rows, K = Dp.
    q = jnp.einsum('hmd,hcd->hmc', xg, wq, preferred_element_type=jnp.float32)
    k = jnp.einsum('hmd,hcd->hmc', xg, wk, preferred_element_type=jnp.float32)
    v = jnp.einsum('hmd,hcd->hmc', xg, wv, preferred_element_type=jnp.float32)

    dh = q.shape[-1]
    G = H * BB
    # Regroup (H, BB*T, dh) -> (H*BB, T, dh): attention never mixes batch rows
    # (pure vreg re-indexing; T=8 keeps sublane tiles aligned).
    qb = q.reshape(G, T, dh).astype(jnp.bfloat16)
    kb = k.reshape(G, T, dh).astype(jnp.bfloat16)
    vb = v.reshape(G, T, dh).astype(jnp.bfloat16)

    # Scaled dot-product attention (scale pre-folded into Wq); softmax in f32.
    s = jnp.einsum('gik,gjk->gij', qb, kb, preferred_element_type=jnp.float32)
    s = s - jnp.max(s, axis=-1, keepdims=True)
    p = jnp.exp(s)
    p = p * pl.reciprocal(jnp.sum(p, axis=-1, keepdims=True), approx=True)

    o = jnp.einsum('gij,gjk->gik', p.astype(jnp.bfloat16), vb,
                   preferred_element_type=jnp.float32)           # (G, T, dh)

    # Per-head output projection (batched over H, M = BB*T), head recombination
    # as a major-dim sum (no lane concat).  For production dim_head >= 8,
    # replace with one (M, H*dh) @ (H*dh, D) contraction.
    ob = o.reshape(H, M, dh).astype(jnp.bfloat16)
    mh = jnp.einsum('hmc,hcd->hmd', ob, w0, preferred_element_type=jnp.float32)
    mhsa = jnp.sum(mh, axis=0)                                   # (M, Dp)

    # TODO(synk): nn.Dropout(p=0.1) treated as inference-mode identity.
    r = mhsa + x                                                 # pad lanes stay 0

    # LayerNorm over the true model dim D: pad lanes are zero, so full-lane
    # sums divided by D are exact.  Single-pass biased variance (E[r^2]-mu^2).
    inv_d = 1.0 / D
    mu = jnp.sum(r, axis=-1, keepdims=True) * inv_d
    ms = jnp.sum(r * r, axis=-1, keepdims=True) * inv_d
    y = (r - mu) * jax.lax.rsqrt(ms - mu * mu + eps)
    y = y * g_ref[...] + b_ref[...]                  # gamma/beta pad = 0 -> pad lanes 0
    o_ref[...] = y.astype(o_ref.dtype)


# ------------------------------ glue / wrapper ------------------------------

def _vmem_limit_bytes():
    """~75% of physical VMEM: ~48 MiB on v7x (64 MiB/TC), ~96 MiB on v5e/v6e."""
    try:
        cap = int(pltpu.get_tpu_info().vmem_capacity_bytes)
    except Exception:
        cap = 64 * 1024 * 1024                   # conservative (v7x-sized) fallback
    return max(32 * 1024 * 1024, min((cap * 3) // 4, 100 * 1024 * 1024))


def _default_batch_block(batch):
    """Single-TC chips (v5e/v6e): one fat grid step.  2-TC v7x: >=2 parallel steps."""
    try:
        kind = jax.devices()[0].device_kind.lower()
    except Exception:
        kind = ""
    two_tc = "v7" in kind
    if two_tc:
        return batch // 2 if batch % 2 == 0 and batch >= 2 else 1
    return batch


def transformer_block_a(x, w_qkv, w_0, gamma, beta, *, heads, dim_head,
                        eps=1e-5, batch_block=None):
    """x: (B, T, D); w_qkv: (3*H*dh, D) torch Linear weight; w_0: (D, H*dh)."""
    B, T, D = x.shape
    Hdh = heads * dim_head
    assert w_qkv.shape == (3 * Hdh, D) and w_0.shape == (D, Hdh)
    if batch_block is None:
        batch_block = _default_batch_block(B)
    assert B % batch_block == 0
    scale = float(dim_head) ** (-0.5)

    LANE = 128
    Dp = ((D + LANE - 1) // LANE) * LANE      # lane-dense padded model dim

    # to_qvk rows are c = d*3*H + k*H + h (einops 'b t (d k h)') -> per-head
    # (H, dh, Din) slabs; attention scale folded into Wq before the bf16 cast.
    w3 = w_qkv.reshape(dim_head, 3, heads, D)
    w3 = jnp.transpose(w3, (1, 2, 0, 3))      # (k, h, dh, Din)
    wq3 = w3[0] * scale
    wk3, wv3 = w3[1], w3[2]
    # W_0 columns are e = h*dh + d ('b h t d -> b t (h d)') -> (H, dh, Dout).
    w0h = jnp.transpose(w_0.reshape(D, heads, dim_head), (1, 2, 0))

    def pad_last(a):
        return jnp.pad(a, [(0, 0)] * (a.ndim - 1) + [(0, Dp - D)])

    x2 = pad_last(x.astype(jnp.float32)).reshape(B * T, Dp)
    wq3, wk3, wv3, w0h = (pad_last(w).astype(jnp.bfloat16)
                          for w in (wq3, wk3, wv3, w0h))
    g2 = pad_last(gamma.astype(jnp.float32).reshape(1, D))
    b2 = pad_last(beta.astype(jnp.float32).reshape(1, D))

    kernel = functools.partial(_block_kernel, batch_block=batch_block,
                               seq_len=T, heads=heads, dim=D, eps=eps)

    const = dict(pipeline_mode=pl.Buffered(1))   # grid-invariant: single-buffer
    Mblk = batch_block * T

    out = pl.pallas_call(
        kernel,
        out_shape=jax.ShapeDtypeStruct((B * T, Dp), jnp.float32),
        grid_spec=pltpu.PrefetchScalarGridSpec(
            num_scalar_prefetch=0,
            grid=(B // batch_block,),
            in_specs=[
                pl.BlockSpec((Mblk, Dp), lambda b: (b, 0)),                          # x
                pl.BlockSpec((heads, dim_head, Dp), lambda b: (0, 0, 0), **const),   # Wq*scale
                pl.BlockSpec((heads, dim_head, Dp), lambda b: (0, 0, 0), **const),   # Wk
                pl.BlockSpec((heads, dim_head, Dp), lambda b: (0, 0, 0), **const),   # Wv
                pl.BlockSpec((heads, dim_head, Dp), lambda b: (0, 0, 0), **const),   # W0 per-head
                pl.BlockSpec((1, Dp), lambda b: (0, 0), **const),                    # gamma
                pl.BlockSpec((1, Dp), lambda b: (0, 0), **const),                    # beta
            ],
            out_specs=pl.BlockSpec((Mblk, Dp), lambda b: (b, 0)),
        ),
        compiler_params=pltpu.CompilerParams(
            dimension_semantics=("parallel",),
            vmem_limit_bytes=_vmem_limit_bytes()),
    )(x2, wq3, wk3, wv3, w0h, g2, b2)

    return out.reshape(B, T, Dp)[..., :D]


# ------------------------------ pure-JAX reference ------------------------------

def reference(x, w_qkv, w_0, gamma, beta, *, heads, dim_head, eps=1e-5):
    B, T, D = x.shape
    qkv = x @ w_qkv.T                                      # (B, T, 3*H*dh)
    qkv = qkv.reshape(B, T, dim_head, 3, heads)            # 'b t (d k h)'
    qkv = jnp.transpose(qkv, (3, 0, 4, 1, 2))              # (3, B, H, T, dh)
    q, k, v = qkv[0], qkv[1], qkv[2]
    scale = float(dim_head) ** (-0.5)
    s = jnp.einsum('bhid,bhjd->bhij', q, k) * scale
    a = jax.nn.softmax(s, axis=-1)
    o = jnp.einsum('bhij,bhjd->bhid', a, v)
    o = jnp.transpose(o, (0, 2, 1, 3)).reshape(B, T, heads * dim_head)
    mhsa = o @ w_0.T
    r = mhsa + x
    mu = r.mean(-1, keepdims=True)
    var = ((r - mu) ** 2).mean(-1, keepdims=True)
    return (r - mu) / jnp.sqrt(var + eps) * gamma + beta


# ------------------------------ main ------------------------------

if __name__ == "__main__":
    B, T, D = 2, 8, 32
    heads = 8
    dim_head = D // heads          # 4 (module default: dim/heads)
    Hdh = heads * dim_head

    key = jax.random.PRNGKey(0)
    kx, kqkv, kw0, kg, kb = jax.random.split(key, 5)

    x = jax.random.normal(kx, (B, T, D), dtype=jnp.float32)
    w_qkv = jax.random.normal(kqkv, (3 * Hdh, D), dtype=jnp.float32) * 0.08
    w_0 = jax.random.normal(kw0, (D, Hdh), dtype=jnp.float32) * 0.08
    gamma = 1.0 + 0.05 * jax.random.normal(kg, (D,), dtype=jnp.float32)
    beta = 0.05 * jax.random.normal(kb, (D,), dtype=jnp.float32)

    ref = reference(x, w_qkv, w_0, gamma, beta, heads=heads, dim_head=dim_head)

    # bb=1: grid=(2,) "parallel" steps (feeds both v7x TensorCores).
    # bb=2: one fat step (single-TC v5e/v6e).  None: generation-aware default.
    for bb in (1, 2, None):
        out = jax.block_until_ready(
            transformer_block_a(x, w_qkv, w_0, gamma, beta, heads=heads,
                                dim_head=dim_head, batch_block=bb))
        assert out.shape == (B, T, D)
        err = float(jnp.max(jnp.abs(out - ref)))
        # Tolerance accounts for bf16 MXU operands and approx reciprocal.
        assert jnp.allclose(out, ref, atol=3e-2, rtol=3e-2), \
            f"batch_block={bb}: max abs err = {err}"
    print("KERNEL_OK")
</pallas_src>

<mosaic_0001>
module attributes {stable_mosaic.version = 11 : i64} {
  func.func @_block_kernel(%arg0: i32, %arg1: memref<8x128xf32, #tpu.memory_space<vmem>>, %arg2: memref<8x4x128xbf16, #tpu.memory_space<vmem>>, %arg3: memref<8x4x128xbf16, #tpu.memory_space<vmem>>, %arg4: memref<8x4x128xbf16, #tpu.memory_space<vmem>>, %arg5: memref<8x4x128xbf16, #tpu.memory_space<vmem>>, %arg6: memref<1x128xf32, #tpu.memory_space<vmem>>, %arg7: memref<1x128xf32, #tpu.memory_space<vmem>>, %arg8: memref<8x128xf32, #tpu.memory_space<vmem>>) attributes {dimension_semantics = [#tpu.dimension_semantics<parallel>], iteration_bounds = array<i64: 2>, scalar_prefetch = 0 : i64, scratch_operands = 0 : i64, tpu.core_type = #tpu.core_type<tc>, window_params = [{transform_indices = @transform_0, window_bounds = array<i64: 8, 128>}, {pipeline_mode = #tpu.pipeline_mode<synchronous>, transform_indices = @transform_1, window_bounds = array<i64: 8, 4, 128>}, {pipeline_mode = #tpu.pipeline_mode<synchronous>, transform_indices = @transform_2, window_bounds = array<i64: 8, 4, 128>}, {pipeline_mode = #tpu.pipeline_mode<synchronous>, transform_indices = @transform_3, window_bounds = array<i64: 8, 4, 128>}, {pipeline_mode = #tpu.pipeline_mode<synchronous>, transform_indices = @transform_4, window_bounds = array<i64: 8, 4, 128>}, {pipeline_mode = #tpu.pipeline_mode<synchronous>, transform_indices = @transform_5, window_bounds = array<i64: 1, 128>}, {pipeline_mode = #tpu.pipeline_mode<synchronous>, transform_indices = @transform_6, window_bounds = array<i64: 1, 128>}, {transform_indices = @transform_7, window_bounds = array<i64: 8, 128>}]} {
    %c0 = arith.constant 0 : index
    %c0_0 = arith.constant 0 : index
    %0 = vector.load %arg1[%c0, %c0_0] : memref<8x128xf32, #tpu.memory_space<vmem>>, vector<8x128xf32>
    %1 = arith.truncf %0 : vector<8x128xf32> to vector<8x128xbf16>
    %2 = vector.shape_cast %1 : vector<8x128xbf16> to vector<1x8x128xbf16>
    %3 = vector.shape_cast %2 : vector<1x8x128xbf16> to vector<1x8x128xbf16>
    %4 = vector.broadcast %3 : vector<1x8x128xbf16> to vector<8x8x128xbf16>
    %c0_1 = arith.constant 0 : index
    %c0_2 = arith.constant 0 : index
    %c0_3 = arith.constant 0 : index
    %5 = vector.load %arg2[%c0_1, %c0_2, %c0_3] : memref<8x4x128xbf16, #tpu.memory_space<vmem>>, vector<8x4x128xbf16>
    %c0_4 = arith.constant 0 : index
    %c0_5 = arith.constant 0 : index
    %c0_6 = arith.constant 0 : index
    %6 = vector.load %arg3[%c0_4, %c0_5, %c0_6] : memref<8x4x128xbf16, #tpu.memory_space<vmem>>, vector<8x4x128xbf16>
    %c0_7 = arith.constant 0 : index
    %c0_8 = arith.constant 0 : index
    %c0_9 = arith.constant 0 : index
    %7 = vector.load %arg4[%c0_7, %c0_8, %c0_9] : memref<8x4x128xbf16, #tpu.memory_space<vmem>>, vector<8x4x128xbf16>
    %c0_10 = arith.constant 0 : index
    %c0_11 = arith.constant 0 : index
    %c0_12 = arith.constant 0 : index
    %8 = vector.load %arg5[%c0_10, %c0_11, %c0_12] : memref<8x4x128xbf16, #tpu.memory_space<vmem>>, vector<8x4x128xbf16>
    "tpu.trace_start"() <{level = 10 : i32, message = "hmd,hcd->hmc"}> : () -> ()
    %cst = arith.constant dense<0.000000e+00> : vector<8x8x4xf32>
    %9 = tpu.matmul %4, %5, %cst {dimension_numbers = #tpu.dot_dimension_numbers<[2], [2], [1], [1], [0, 0, 0, 1, 1, 1], [0], [0]>} : vector<8x8x128xbf16>, vector<8x4x128xbf16>, vector<8x8x4xf32> -> vector<8x8x4xf32>
    %cst_13 = arith.constant dense<0.000000e+00> : vector<8x8x4xf32>
    %10 = tpu.matmul %4, %6, %cst_13 {dimension_numbers = #tpu.dot_dimension_numbers<[2], [2], [1], [1], [0, 0, 0, 1, 1, 1], [0], [0]>} : vector<8x8x128xbf16>, vector<8x4x128xbf16>, vector<8x8x4xf32> -> vector<8x8x4xf32>
    %cst_14 = arith.constant dense<0.000000e+00> : vector<8x8x4xf32>
    %11 = tpu.matmul %4, %7, %cst_14 {dimension_numbers = #tpu.dot_dimension_numbers<[2], [2], [1], [1], [0, 0, 0, 1, 1, 1], [0], [0]>} : vector<8x8x128xbf16>, vector<8x4x128xbf16>, vector<8x8x4xf32> -> vector<8x8x4xf32>
    "tpu.trace_stop"() : () -> ()
    %12 = arith.truncf %9 : vector<8x8x4xf32> to vector<8x8x4xbf16>
    %13 = arith.truncf %10 : vector<8x8x4xf32> to vector<8x8x4xbf16>
    %14 = arith.truncf %11 : vector<8x8x4xf32> to vector<8x8x4xbf16>
    "tpu.trace_start"() <{level = 10 : i32, message = "gik,gjk->gij"}> : () -> ()
    %cst_15 = arith.constant dense<0.000000e+00> : vector<8x8x8xf32>
    %15 = tpu.matmul %12, %13, %cst_15 {dimension_numbers = #tpu.dot_dimension_numbers<[2], [2], [1], [1], [0, 0, 0, 1, 1, 1], [0], [0]>} : vector<8x8x4xbf16>, vector<8x8x4xbf16>, vector<8x8x8xf32> -> vector<8x8x8xf32>
    "tpu.trace_stop"() : () -> ()
    %cst_16 = arith.constant dense<0xFF800000> : vector<8x8xf32>
    %16 = vector.multi_reduction <maximumf>, %15, %cst_16 [2] : vector<8x8x8xf32> to vector<8x8xf32>
    %17 = vector.shape_cast %16 : vector<8x8xf32> to vector<8x8x1xf32>
    %18 = vector.broadcast %17 : vector<8x8x1xf32> to vector<8x8x8xf32>
    %19 = arith.subf %15, %18 : vector<8x8x8xf32>
    %20 = math.exp %19 : vector<8x8x8xf32>
    %cst_17 = arith.constant dense<0.000000e+00> : vector<8x8xf32>
    %21 = vector.multi_reduction <add>, %20, %cst_17 [2] : vector<8x8x8xf32> to vector<8x8xf32>
    %22 = vector.shape_cast %21 : vector<8x8xf32> to vector<8x8x1xf32>
    %23 = tpu.reciprocal %22 {approx = true} : vector<8x8x1xf32> -> vector<8x8x1xf32>
    %24 = vector.broadcast %23 : vector<8x8x1xf32> to vector<8x8x8xf32>
    %25 = arith.mulf %20, %24 : vector<8x8x8xf32>
    %26 = arith.truncf %25 : vector<8x8x8xf32> to vector<8x8x8xbf16>
    "tpu.trace_start"() <{level = 10 : i32, message = "gij,gjk->gik"}> : () -> ()
    %cst_18 = arith.constant dense<0.000000e+00> : vector<8x8x4xf32>
    %27 = tpu.matmul %26, %14, %cst_18 {dimension_numbers = #tpu.dot_dimension_numbers<[2], [1], [1], [2], [0, 0, 0, 1, 1, 2], [0], [0]>} : vector<8x8x8xbf16>, vector<8x8x4xbf16>, vector<8x8x4xf32> -> vector<8x8x4xf32>
    "tpu.trace_stop"() : () -> ()
    %28 = arith.truncf %27 : vector<8x8x4xf32> to vector<8x8x4xbf16>
    "tpu.trace_start"() <{level = 10 : i32, message = "hmc,hcd->hmd"}> : () -> ()
    %cst_19 = arith.constant dense<0.000000e+00> : vector<8x8x128xf32>
    %29 = tpu.matmul %28, %8, %cst_19 {dimension_numbers = #tpu.dot_dimension_numbers<[2], [1], [1], [2], [0, 0, 0, 1, 1, 2], [0], [0]>} : vector<8x8x4xbf16>, vector<8x4x128xbf16>, vector<8x8x128xf32> -> vector<8x8x128xf32>
    "tpu.trace_stop"() : () -> ()
    %cst_20 = arith.constant dense<0.000000e+00> : vector<8x128xf32>
    %30 = vector.multi_reduction <add>, %29, %cst_20 [0] : vector<8x8x128xf32> to vector<8x128xf32>
    %31 = arith.addf %30, %0 : vector<8x128xf32>
    %cst_21 = arith.constant dense<0.000000e+00> : vector<8xf32>
    %32 = vector.multi_reduction <add>, %31, %cst_21 [1] : vector<8x128xf32> to vector<8xf32>
    %33 = vector.shape_cast %32 : vector<8xf32> to vector<8x1xf32>
    %cst_22 = arith.constant 3.125000e-02 : f32
    %34 = vector.broadcast %cst_22 : f32 to vector<8x1xf32>
    %35 = arith.mulf %33, %34 : vector<8x1xf32>
    %36 = arith.mulf %31, %31 : vector<8x128xf32>
    %cst_23 = arith.constant dense<0.000000e+00> : vector<8xf32>
    %37 = vector.multi_reduction <add>, %36, %cst_23 [1] : vector<8x128xf32> to vector<8xf32>
    %38 = vector.shape_cast %37 : vector<8xf32> to vector<8x1xf32>
    %cst_24 = arith.constant 3.125000e-02 : f32
    %39 = vector.broadcast %cst_24 : f32 to vector<8x1xf32>
    %40 = arith.mulf %38, %39 : vector<8x1xf32>
    %41 = vector.broadcast %35 : vector<8x1xf32> to vector<8x128xf32>
    %42 = arith.subf %31, %41 : vector<8x128xf32>
    %43 = arith.mulf %35, %35 : vector<8x1xf32>
    %44 = arith.subf %40, %43 : vector<8x1xf32>
    %cst_25 = arith.constant 9.99999974E-6 : f32
    %45 = vector.broadcast %cst_25 : f32 to vector<8x1xf32>
    %46 = arith.addf %44, %45 : vector<8x1xf32>
    %47 = math.rsqrt %46 : vector<8x1xf32>
    %48 = vector.broadcast %47 : vector<8x1xf32> to vector<8x128xf32>
    %49 = arith.mulf %42, %48 : vector<8x128xf32>
    %c0_26 = arith.constant 0 : index
    %c0_27 = arith.constant 0 : index
    %50 = vector.load %arg6[%c0_26, %c0_27] : memref<1x128xf32, #tpu.memory_space<vmem>>, vector<1x128xf32>
    %51 = vector.broadcast %50 : vector<1x128xf32> to vector<8x128xf32>
    %52 = arith.mulf %49, %51 : vector<8x128xf32>
    %c0_28 = arith.constant 0 : index
    %c0_29 = arith.constant 0 : index
    %53 = vector.load %arg7[%c0_28, %c0_29] : memref<1x128xf32, #tpu.memory_space<vmem>>, vector<1x128xf32>
    %54 = vector.broadcast %53 : vector<1x128xf32> to vector<8x128xf32>
    %55 = arith.addf %52, %54 : vector<8x128xf32>
    %c0_30 = arith.constant 0 : index
    %c0_31 = arith.constant 0 : index
    %56 = vector.load %arg8[%c0_30, %c0_31] : memref<8x128xf32, #tpu.memory_space<vmem>>, vector<8x128xf32>
    tpu.vector_store %arg8[%c0_30, %c0_31], %55 {strides = array<i32>} : memref<8x128xf32, #tpu.memory_space<vmem>>, vector<8x128xf32>,
    return
  }
  func.func @transform_0(%arg0: i32) -> (i32, i32) {
    %c0_i32 = arith.constant 0 : i32
    %c0_i32_0 = arith.constant 0 : i32
    return %arg0, %c0_i32 : i32, i32
  }
  func.func @transform_1(%arg0: i32) -> (i32, i32, i32) {
    %c0_i32 = arith.constant 0 : i32
    %c0_i32_0 = arith.constant 0 : i32
    %c0_i32_1 = arith.constant 0 : i32
    %c0_i32_2 = arith.constant 0 : i32
    return %c0_i32, %c0_i32_0, %c0_i32_1 : i32, i32, i32
  }
  func.func @transform_2(%arg0: i32) -> (i32, i32, i32) {
    %c0_i32 = arith.constant 0 : i32
    %c0_i32_0 = arith.constant 0 : i32
    %c0_i32_1 = arith.constant 0 : i32
    %c0_i32_2 = arith.constant 0 : i32
    return %c0_i32, %c0_i32_0, %c0_i32_1 : i32, i32, i32
  }
  func.func @transform_3(%arg0: i32) -> (i32, i32, i32) {
    %c0_i32 = arith.constant 0 : i32
    %c0_i32_0 = arith.constant 0 : i32
    %c0_i32_1 = arith.constant 0 : i32
    %c0_i32_2 = arith.constant 0 : i32
    return %c0_i32, %c0_i32_0, %c0_i32_1 : i32, i32, i32
  }
  func.func @transform_4(%arg0: i32) -> (i32, i32, i32) {
    %c0_i32 = arith.constant 0 : i32
    %c0_i32_0 = arith.constant 0 : i32
    %c0_i32_1 = arith.constant 0 : i32
    %c0_i32_2 = arith.constant 0 : i32
    return %c0_i32, %c0_i32_0, %c0_i32_1 : i32, i32, i32
  }
  func.func @transform_5(%arg0: i32) -> (i32, i32) {
    %c0_i32 = arith.constant 0 : i32
    %c0_i32_0 = arith.constant 0 : i32
    %c0_i32_1 = arith.constant 0 : i32
    return %c0_i32, %c0_i32_0 : i32, i32
  }
  func.func @transform_6(%arg0: i32) -> (i32, i32) {
    %c0_i32 = arith.constant 0 : i32
    %c0_i32_0 = arith.constant 0 : i32
    %c0_i32_1 = arith.constant 0 : i32
    return %c0_i32, %c0_i32_0 : i32, i32
  }
  func.func @transform_7(%arg0: i32) -> (i32, i32) {
    %c0_i32 = arith.constant 0 : i32
    %c0_i32_0 = arith.constant 0 : i32
    return %arg0, %c0_i32 : i32, i32
  }
}

</mosaic_0001>

<llo_original>
// kernel: tpu_custom_call.1
$region0: #{tpu_custom_call.1}
  #allocation0 [shape = 'u32[]', space=smem, size = 0x4, offset = 0x4, fixed_abs, tag = 'smem constant byte address 0x4 - core index']
  #allocation1 [shape = 'u32[72,128]{1,0:T(1,128)}', space=vmem, size = 0x9000, scoped, tag = 'internal scratch']
  %s0 = inlined_call_operand.hbm [shape: f32[16,128], index: 0, kind: input, shape index: {}]
  %s1 = inlined_call_operand.hbm [shape: bf16[8,4,128], index: 1, kind: input, shape index: {}]
  %s2 = inlined_call_operand.hbm [shape: bf16[8,4,128], index: 2, kind: input, shape index: {}]
  %s3 = inlined_call_operand.hbm [shape: bf16[8,4,128], index: 3, kind: input, shape index: {}]
  %s4 = inlined_call_operand.hbm [shape: bf16[8,4,128], index: 4, kind: input, shape index: {}]
  %s5 = inlined_call_operand.vmem [shape: f32[1,128], index: 5, kind: input, shape index: {}]
  %s6 = inlined_call_operand.vmem [shape: f32[1,128], index: 6, kind: input, shape index: {}]
  %s7 = inlined_call_operand.hbm [shape: f32[16,128], index: 7, kind: output, shape index: {}]
  %s8 = sld [smem:[#allocation0]]
  $region81: #{tpu_custom_call.1} parent=0
    _
  %s10 = ssub.s32 1, %s8
  %s11 = scalar_select 0, %s10, %s8
  $region1: #{tpu_custom_call.1} parent=0
    #allocation2 [shape = 'u8[8192]{0}', space=vmem, size = 0x2000, scoped, tag = 'input window, operand 0']
    #allocation3 [shape = 's32[2]{0}', space=sflag, size = 0x8, scoped, tag = 'scoped memory for tpu_custom_call.1']
    #allocation4 [shape = 's32[2]{0}', space=sflag, size = 0x8, scoped, tag = 'scoped memory for tpu_custom_call.1']
    #allocation5 [shape = 'u8[8192]{0}', space=vmem, size = 0x2000, scoped, tag = 'input window, operand 1, single buffered']
    #allocation6 [shape = 's32[1]{0}', space=sflag, size = 0x4, scoped, tag = 'scoped memory for tpu_custom_call.1']
    #allocation7 [shape = 'u8[8192]{0}', space=vmem, size = 0x2000, scoped, tag = 'input window, operand 2, single buffered']
    #allocation8 [shape = 'u8[8192]{0}', space=vmem, size = 0x2000, scoped, tag = 'input window, operand 3, single buffered']
    #allocation9 [shape = 's32[1]{0}', space=sflag, size = 0x4, scoped, tag = 'scoped memory for tpu_custom_call.1']
    #allocation10 [shape = 'u8[8192]{0}', space=vmem, size = 0x2000, scoped, tag = 'input window, operand 4, single buffered']
    #allocation11 [shape = 'u8[8192]{0}', space=vmem, size = 0x2000, scoped, tag = 'output window, operand 0']
    %12 = vsyncpa [#allocation3], 0
    %s13 = scalar_lea.sflag [#allocation3], 1
    %14 = vsyncpa %s13, 0
    %15 = vsyncpa [#allocation6], 0
    %16 = vsyncpa [#allocation9], 0
    %17 = vsyncpa [#allocation4], 0
    %s18 = scalar_lea.sflag [#allocation4], 1
    %19 = vsyncpa %s18, 0
    loop: start=0, step=1, limit=4
    $region2: #{tpu_custom_call.1} parent=1 // loop_pre_header
      _
    $region3: #{tpu_custom_call.1} parent=1 // loop_header
      %s21 = sphi 0, %s25
      %p22 = scmp.ge.s32.totalorder %s21, 4
      %s31 = sphi 0, %s33
      %s34 = sphi 0, %s31
      %s35 = sphi 0, %s34
      %s51 = sphi 0, %s35
      %s55 = sphi 0, %s55
      %s57 = sphi 0, %s55
      %s58 = sphi 0, %s57
      %s72 = sphi 0, %s58
      %s76 = sphi 0, %s76
      %s78 = sphi 0, %s76
      %s79 = sphi 0, %s78
      %s93 = sphi 0, %s79
      %s97 = sphi 0, %s97
      %s99 = sphi 0, %s97
      %s100 = sphi 0, %s99
      %s114 = sphi 0, %s100
      %s118 = sphi 0, %s118
      %s120 = sphi 0, %s118
      %s121 = sphi 0, %s120
      %s135 = sphi 0, %s121
      %s139 = sphi 0, %s139
      %s141 = sphi 0, %s139
      %s142 = sphi 0, %s141
      %s156 = sphi 0, %s142
      %s160 = sphi 0, %s160
      %s162 = sphi 0, %s160
      %s163 = sphi 0, %s162
      %s177 = sphi 0, %s163
      %s183 = sphi 0, %s185
      %s186 = sphi 0, %s183
      %s187 = sphi 0, %s186
      %s203 = sphi 0, %s187
    $region4: #{tpu_custom_call.1} parent=1 // loop_header_branch
      %24 = sbr.rel (%p22) target = $region8
    $region5: #{tpu_custom_call.1} parent=1 // loop_body
      %s26 = ssub.s32 %s21, 1
      %s27 = ssub.s32 %s21, 2
      %s28 = sadd.s32 %s21, 1
      %s29 = ssub.s32 %s21, %s28
      %p30 = scmp.eq.s32.totalorder %s29, 0
      %s32 = sadd.s32 %s31, 1
      %s33 = scalar_select %p30, %s31, %s32
      %p36 = pneg %p30
      %p37 = scmp.eq.s32.totalorder %s21, 1
      %p38 = por %p36, %p37
      %p39 = scmp.ne.s32.totalorder %s31, %s34
      %p40 = scmp.eq.s32.totalorder %s21, 0
      %p41 = por %p39, %p40
      %p42 = scmp.ne.s32.totalorder %s31, %s34
      %p43 = scmp.eq.s32.totalorder %s26, 1
      %p44 = por %p42, %p43
      %p45 = scmp.ne.s32.totalorder %s34, %s35
      %p46 = scmp.eq.s32.totalorder %s26, 0
      %p47 = por %p45, %p46
      %p48 = scmp.ne.s32.totalorder %s34, %s35
      %p49 = scmp.eq.s32.totalorder %s27, 1
      %p50 = por %p48, %p49
      %p52 = scmp.ne.s32.totalorder %s35, %s51
      %p53 = scmp.eq.s32.totalorder %s27, 0
      %p54 = por %p52, %p53
      %s56 = sadd.s32 %s55, 1
      %p59 = scmp.eq.s32.totalorder %s21, 1
      %p60 = scmp.ne.s32.totalorder %s55, %s57
      %p61 = scmp.eq.s32.totalorder %s21, 0
      %p62 = por %p60, %p61
      %p63 = scmp.ne.s32.totalorder %s55, %s57
      %p64 = scmp.eq.s32.totalorder %s26, 1
      %p65 = por %p63, %p64
      %p66 = scmp.ne.s32.totalorder %s57, %s58
      %p67 = scmp.eq.s32.totalorder %s26, 0
      %p68 = por %p66, %p67
      %p69 = scmp.ne.s32.totalorder %s57, %s58
      %p70 = scmp.eq.s32.totalorder %s27, 1
      %p71 = por %p69, %p70
      %p73 = scmp.ne.s32.totalorder %s58, %s72
      %p74 = scmp.eq.s32.totalorder %s27, 0
      %p75 = por %p73, %p74
      %s77 = sadd.s32 %s76, 1
      %p80 = scmp.eq.s32.totalorder %s21, 1
      %p81 = scmp.ne.s32.totalorder %s76, %s78
      %p82 = scmp.eq.s32.totalorder %s21, 0
      %p83 = por %p81, %p82
      %p84 = scmp.ne.s32.totalorder %s76, %s78
      %p85 = scmp.eq.s32.totalorder %s26, 1
      %p86 = por %p84, %p85
      %p87 = scmp.ne.s32.totalorder %s78, %s79
      %p88 = scmp.eq.s32.totalorder %s26, 0
      %p89 = por %p87, %p88
      %p90 = scmp.ne.s32.totalorder %s78, %s79
      %p91 = scmp.eq.s32.totalorder %s27, 1
      %p92 = por %p90, %p91
      %p94 = scmp.ne.s32.totalorder %s79, %s93
      %p95 = scmp.eq.s32.totalorder %s27, 0
      %p96 = por %p94, %p95
      %s98 = sadd.s32 %s97, 1
      %p101 = scmp.eq.s32.totalorder %s21, 1
      %p102 = scmp.ne.s32.totalorder %s97, %s99
      %p103 = scmp.eq.s32.totalorder %s21, 0
      %p104 = por %p102, %p103
      %p105 = scmp.ne.s32.totalorder %s97, %s99
      %p106 = scmp.eq.s32.totalorder %s26, 1
      %p107 = por %p105, %p106
      %p108 = scmp.ne.s32.totalorder %s99, %s100
      %p109 = scmp.eq.s32.totalorder %s26, 0
      %p110 = por %p108, %p109
      %p111 = scmp.ne.s32.totalorder %s99, %s100
      %p112 = scmp.eq.s32.totalorder %s27, 1
      %p113 = por %p111, %p112
      %p115 = scmp.ne.s32.totalorder %s100, %s114
      %p116 = scmp.eq.s32.totalorder %s27, 0
      %p117 = por %p115, %p116
      %s119 = sadd.s32 %s118, 1
      %p122 = scmp.eq.s32.totalorder %s21, 1
      %p123 = scmp.ne.s32.totalorder %s118, %s120
      %p124 = scmp.eq.s32.totalorder %s21, 0
      %p125 = por %p123, %p124
      %p126 = scmp.ne.s32.totalorder %s118, %s120
      %p127 = scmp.eq.s32.totalorder %s26, 1
      %p128 = por %p126, %p127
      %p129 = scmp.ne.s32.totalorder %s120, %s121
      %p130 = scmp.eq.s32.totalorder %s26, 0
      %p131 = por %p129, %p130
      %p132 = scmp.ne.s32.totalorder %s120, %s121
      %p133 = scmp.eq.s32.totalorder %s27, 1
      %p134 = por %p132, %p133
      %p136 = scmp.ne.s32.totalorder %s121, %s135
      %p137 = scmp.eq.s32.totalorder %s27, 0
      %p138 = por %p136, %p137
      %s140 = sadd.s32 %s139, 1
      %p143 = scmp.eq.s32.totalorder %s21, 1
      %p144 = scmp.ne.s32.totalorder %s139, %s141
      %p145 = scmp.eq.s32.totalorder %s21, 0
      %p146 = por %p144, %p145
      %p147 = scmp.ne.s32.totalorder %s139, %s141
      %p148 = scmp.eq.s32.totalorder %s26, 1
      %p149 = por %p147, %p148
      %p150 = scmp.ne.s32.totalorder %s141, %s142
      %p151 = scmp.eq.s32.totalorder %s26, 0
      %p152 = por %p150, %p151
      %p153 = scmp.ne.s32.totalorder %s141, %s142
      %p154 = scmp.eq.s32.totalorder %s27, 1
      %p155 = por %p153, %p154
      %p157 = scmp.ne.s32.totalorder %s142, %s156
      %p158 = scmp.eq.s32.totalorder %s27, 0
      %p159 = por %p157, %p158
      %s161 = sadd.s32 %s160, 1
      %p164 = scmp.eq.s32.totalorder %s21, 1
      %p165 = scmp.ne.s32.totalorder %s160, %s162
      %p166 = scmp.eq.s32.totalorder %s21, 0
      %p167 = por %p165, %p166
      %p168 = scmp.ne.s32.totalorder %s160, %s162
      %p169 = scmp.eq.s32.totalorder %s26, 1
      %p170 = por %p168, %p169
      %p171 = scmp.ne.s32.totalorder %s162, %s163
      %p172 = scmp.eq.s32.totalorder %s26, 0
      %p173 = por %p171, %p172
      %p174 = scmp.ne.s32.totalorder %s162, %s163
      %p175 = scmp.eq.s32.totalorder %s27, 1
      %p176 = por %p174, %p175
      %p178 = scmp.ne.s32.totalorder %s163, %s177
      %p179 = scmp.eq.s32.totalorder %s27, 0
      %p180 = por %p178, %p179
      %s181 = ssub.s32 %s21, %s28
      %p182 = scmp.eq.s32.totalorder %s181, 0
      %s184 = sadd.s32 %s183, 1
      %s185 = scalar_select %p182, %s183, %s184
      %p188 = pneg %p182
      %p189 = scmp.eq.s32.totalorder %s21, 1
      %p190 = por %p188, %p189
      %p191 = scmp.ne.s32.totalorder %s183, %s186
      %p192 = scmp.eq.s32.totalorder %s21, 0
      %p193 = por %p191, %p192
      %p194 = scmp.ne.s32.totalorder %s183, %s186
      %p195 = scmp.eq.s32.totalorder %s26, 1
      %p196 = por %p194, %p195
      %p197 = scmp.ne.s32.totalorder %s186, %s187
      %p198 = scmp.eq.s32.totalorder %s26, 0
      %p199 = por %p197, %p198
      %p200 = scmp.ne.s32.totalorder %s186, %s187
      %p201 = scmp.eq.s32.totalorder %s27, 1
      %p202 = por %p200, %p201
      %p204 = scmp.ne.s32.totalorder %s187, %s203
      %p205 = scmp.eq.s32.totalorder %s27, 0
      %p206 = por %p204, %p205
      %p207 = scmp.le.s32.totalorder 1, %s21
      %p208 = scmp.lt.s32.totalorder %s21, 3
      %p209 = pnand %p207, %p208
      %p210 = pneg %p209
      // Predicated region
      $region9: #{tpu_custom_call.1} parent=5 // pred_check
        _
      $region10: #{tpu_custom_call.1} parent=5 // pred_check_branch
        %212 = sbr.rel (%p209) target = $region12
      $region11: #{tpu_custom_call.1} parent=5 // pred_region
        %s213 = ssub.s32 %s21, 1
        // Predicated region
        $region13: #{tpu_custom_call.1} parent=11 // pred_check
          %p214 = pneg %p68
        $region14: #{tpu_custom_call.1} parent=11 // pred_check_branch
          %216 = sbr.rel (%p214) target = $region16
        $region15: #{tpu_custom_call.1} parent=11 // pred_region
          %218 = vsyncadd [#allocation6], 0
          %s219 = sshll.u32 %s1, 4
          %s220 = int_to_ptr.hbm [resolvable:$true] %s219
          %s221 = sshll.u32 [#allocation5], 4
          %s222 = int_to_ptr.vmem [resolvable:$true] %s221
          %227 = dma.hbm_to_vmem [thread:$0]  %s220, 256, %s222, [#allocation6], 32, 32, 2
        $region16: #{tpu_custom_call.1} parent=11 // pred_fallthru
          _
        // Predicated region
        $region17: #{tpu_custom_call.1} parent=11 // pred_check
          %p228 = pneg %p89
        $region18: #{tpu_custom_call.1} parent=11 // pred_check_branch
          %230 = sbr.rel (%p228) target = $region20
        $region19: #{tpu_custom_call.1} parent=11 // pred_region
          %232 = vsyncadd [#allocation6], 0
          %s233 = sshll.u32 %s2, 4
          %s234 = int_to_ptr.hbm [resolvable:$true] %s233
          %s235 = sshll.u32 [#allocation7], 4
          %s236 = int_to_ptr.vmem [resolvable:$true] %s235
          %241 = dma.hbm_to_vmem [thread:$0]  %s234, 256, %s236, [#allocation6], 32, 32, 2
        $region20: #{tpu_custom_call.1} parent=11 // pred_fallthru
          _
        // Predicated region
        $region21: #{tpu_custom_call.1} parent=11 // pred_check
          %p242 = pneg %p110
        $region22: #{tpu_custom_call.1} parent=11 // pred_check_branch
          %244 = sbr.rel (%p242) target = $region24
        $region23: #{tpu_custom_call.1} parent=11 // pred_region
          %246 = vsyncadd [#allocation9], 0
          %s247 = sshll.u32 %s3, 4
          %s248 = int_to_ptr.hbm [resolvable:$true] %s247
          %s249 = sshll.u32 [#allocation8], 4
          %s250 = int_to_ptr.vmem [resolvable:$true] %s249
          %255 = dma.hbm_to_vmem [thread:$0]  %s248, 256, %s250, [#allocation9], 32, 32, 2
        $region24: #{tpu_custom_call.1} parent=11 // pred_fallthru
          _
        // Predicated region
        $region25: #{tpu_custom_call.1} parent=11 // pred_check
          %p256 = pneg %p131
        $region26: #{tpu_custom_call.1} parent=11 // pred_check_branch
          %258 = sbr.rel (%p256) target = $region28
        $region27: #{tpu_custom_call.1} parent=11 // pred_region
          %260 = vsyncadd [#allocation9], 0
          %s261 = sshll.u32 %s4, 4
          %s262 = int_to_ptr.hbm [resolvable:$true] %s261
          %s263 = sshll.u32 [#allocation10], 4
          %s264 = int_to_ptr.vmem [resolvable:$true] %s263
          %269 = dma.hbm_to_vmem [thread:$0]  %s262, 256, %s264, [#allocation9], 32, 32, 2
        $region28: #{tpu_custom_call.1} parent=11 // pred_fallthru
          _
        // Predicated region
        $region29: #{tpu_custom_call.1} parent=11 // pred_check
          %p270 = pneg %p152
        $region30: #{tpu_custom_call.1} parent=11 // pred_check_branch
          %272 = sbr.rel (%p270) target = $region32
        $region31: #{tpu_custom_call.1} parent=11 // pred_region
          _
        $region32: #{tpu_custom_call.1} parent=11 // pred_fallthru
          _
        // Predicated region
        $region33: #{tpu_custom_call.1} parent=11 // pred_check
          %p273 = pneg %p173
        $region34: #{tpu_custom_call.1} parent=11 // pred_check_branch
          %275 = sbr.rel (%p273) target = $region36
        $region35: #{tpu_custom_call.1} parent=11 // pred_region
          _
        $region36: #{tpu_custom_call.1} parent=11 // pred_fallthru
          _
      $region12: #{tpu_custom_call.1} parent=5 // pred_fallthru
        _
      %p276 = scmp.lt.s32.totalorder %s21, 2
      // Predicated region
      $region37: #{tpu_custom_call.1} parent=5 // pred_check
        %p277 = pneg %p276
      $region38: #{tpu_custom_call.1} parent=5 // pred_check_branch
        %279 = sbr.rel (%p277) target = $region40
      $region39: #{tpu_custom_call.1} parent=5 // pred_region
        // Predicated region
        $region41: #{tpu_custom_call.1} parent=39 // pred_check
          %p280 = pneg %p41
        $region42: #{tpu_custom_call.1} parent=39 // pred_check_branch
          %282 = sbr.rel (%p280) target = $region44
        $region43: #{tpu_custom_call.1} parent=39 // pred_region
          %s283 = sand.u32 %s31, 1
          %s284 = scalar_lea.sflag [#allocation3], %s283
          %s285 = sand.u32 %s31, 1
          %s286 = smul.addr %s285, 8
          %s287 = scalar_lea.vmem [#allocation2], %s286
          %289 = vsyncadd %s284, 0
          %s290 = smul.addr %s21, 8
          %s291 = scalar_lea.hbm %s0, %s290
          %s293 = sshll.u32 %s291, 4
          %s294 = int_to_ptr.hbm [resolvable:$true] %s293
          %s295 = sshll.u32 %s287, 4
          %s296 = int_to_ptr.vmem [resolvable:$true] %s295
          %298 = dma.hbm_to_vmem [thread:$0]  %s294, 128, %s296, %s284
        $region44: #{tpu_custom_call.1} parent=39 // pred_fallthru
          _
      $region40: #{tpu_custom_call.1} parent=5 // pred_fallthru
        _
      %p299 = scmp.le.s32.totalorder 1, %s21
      %p300 = scmp.lt.s32.totalorder %s21, 3
      %p301 = pnand %p299, %p300
      %p302 = pneg %p301
      // Predicated region
      $region45: #{tpu_custom_call.1} parent=5 // pred_check
        _
      $region46: #{tpu_custom_call.1} parent=5 // pred_check_branch
        %304 = sbr.rel (%p301) target = $region48
      $region47: #{tpu_custom_call.1} parent=5 // pred_region
        %s305 = ssub.s32 %s21, 1
        %s306 = sand.u32 %s34, 1
        %s307 = scalar_lea.sflag [#allocation3], %s306
        %s308 = sand.u32 %s34, 1
        %s309 = smul.addr %s308, 8
        %s310 = scalar_lea.vmem [#allocation2], %s309
        // Predicated region
        $region49: #{tpu_custom_call.1} parent=47 // pred_check
          %p311 = pneg %p47
        $region50: #{tpu_custom_call.1} parent=47 // pred_check_branch
          %313 = sbr.rel (%p311) target = $region52
        $region51: #{tpu_custom_call.1} parent=47 // pred_region
          %315 = dma.done %s307, 128
        $region52: #{tpu_custom_call.1} parent=47 // pred_fallthru
          _
        // Predicated region
        $region53: #{tpu_custom_call.1} parent=47 // pred_check
          %p316 = pneg %p68
        $region54: #{tpu_custom_call.1} parent=47 // pred_check_branch
          %318 = sbr.rel (%p316) target = $region56
        $region55: #{tpu_custom_call.1} parent=47 // pred_region
          %320 = dma.done [#allocation6], 256
        $region56: #{tpu_custom_call.1} parent=47 // pred_fallthru
          _
        // Predicated region
        $region57: #{tpu_custom_call.1} parent=47 // pred_check
          %p321 = pneg %p89
        $region58: #{tpu_custom_call.1} parent=47 // pred_check_branch
          %323 = sbr.rel (%p321) target = $region60
        $region59: #{tpu_custom_call.1} parent=47 // pred_region
          %325 = dma.done [#allocation6], 256
        $region60: #{tpu_custom_call.1} parent=47 // pred_fallthru
          _
        // Predicated region
        $region61: #{tpu_custom_call.1} parent=47 // pred_check
          %p326 = pneg %p110
        $region62: #{tpu_custom_call.1} parent=47 // pred_check_branch
          %328 = sbr.rel (%p326) target = $region64
        $region63: #{tpu_custom_call.1} parent=47 // pred_region
          %330 = dma.done [#allocation9], 256
        $region64: #{tpu_custom_call.1} parent=47 // pred_fallthru
          _
        // Predicated region
        $region65: #{tpu_custom_call.1} parent=47 // pred_check
          %p331 = pneg %p131
        $region66: #{tpu_custom_call.1} parent=47 // pred_check_branch
          %333 = sbr.rel (%p331) target = $region68
        $region67: #{tpu_custom_call.1} parent=47 // pred_region
          %335 = dma.done [#allocation9], 256
        $region68: #{tpu_custom_call.1} parent=47 // pred_fallthru
          _
        %s336 = sand.u32 %s34, 1
        %s337 = scalar_lea.sflag [#allocation3], %s336
        %s338 = sand.u32 %s34, 1
        %s339 = smul.addr %s338, 8
        %s340 = scalar_lea.vmem [#allocation2], %s339
        %p341 = pneg %p47
        %p342 = pneg %p44
        %p343 = pneg %p68
        %p344 = pneg %p65
        %p345 = pneg %p89
        %p346 = pneg %p86
        %p347 = pneg %p110
        %p348 = pneg %p107
        %p349 = pneg %p131
        %p350 = pneg %p128
        %p351 = pneg %p152
        %p352 = pneg %p149
        %p353 = pneg %p173
        %p354 = pneg %p170
        %p355 = pneg %p199
        %p356 = pneg %p196
        %s357 = sand.u32 %s186, 1
        %s358 = scalar_lea.sflag [#allocation4], %s357
        %s359 = sand.u32 %s186, 1
        %s360 = smul.addr %s359, 8
        %s361 = scalar_lea.vmem [#allocation11], %s360
        %v363 = vld [vmem:[%s310] sm:$0xff]
        %v364 = vpack.c.bf16 %v363, %v363
        %v365 = vld [vmem:[#allocation5] sm:$0x3]
        %v366 = vld [vmem:[#allocation5 + $0x2] sm:$0x3]
        %v367 = vld [vmem:[#allocation5 + $0x4] sm:$0x3]
        %v368 = vld [vmem:[#allocation5 + $0x6] sm:$0x3]
        %v369 = vld [vmem:[#allocation5 + $0x8] sm:$0x3]
        %v370 = vld [vmem:[#allocation5 + $0xa] sm:$0x3]
        %v371 = vld [vmem:[#allocation5 + $0xc] sm:$0x3]
        %v372 = vld [vmem:[#allocation5 + $0xe] sm:$0x3]
        %v373 = vld [vmem:[#allocation7] sm:$0x3]
        %v374 = vld [vmem:[#allocation7 + $0x2] sm:$0x3]
        %v375 = vld [vmem:[#allocation7 + $0x4] sm:$0x3]
        %v376 = vld [vmem:[#allocation7 + $0x6] sm:$0x3]
        %v377 = vld [vmem:[#allocation7 + $0x8] sm:$0x3]
        %v378 = vld [vmem:[#allocation7 + $0xa] sm:$0x3]
        %v379 = vld [vmem:[#allocation7 + $0xc] sm:$0x3]
        %v380 = vld [vmem:[#allocation7 + $0xe] sm:$0x3]
        %v381 = vld [vmem:[#allocation8] sm:$0x3]
        %v382 = vld [vmem:[#allocation8 + $0x2] sm:$0x3]
        %v383 = vld [vmem:[#allocation8 + $0x4] sm:$0x3]
        %v384 = vld [vmem:[#allocation8 + $0x6] sm:$0x3]
        %v385 = vld [vmem:[#allocation8 + $0x8] sm:$0x3]
        %v386 = vld [vmem:[#allocation8 + $0xa] sm:$0x3]
        %v387 = vld [vmem:[#allocation8 + $0xc] sm:$0x3]
        %v388 = vld [vmem:[#allocation8 + $0xe] sm:$0x3]
        %v389 = vld [vmem:[#allocation10] sm:$0x3]
        %v390 = vld [vmem:[#allocation10 + $0x2] sm:$0x3]
        %v391 = vld [vmem:[#allocation10 + $0x4] sm:$0x3]
        %v392 = vld [vmem:[#allocation10 + $0x6] sm:$0x3]
        %v393 = vld [vmem:[#allocation10 + $0x8] sm:$0x3]
        %v394 = vld [vmem:[#allocation10 + $0xa] sm:$0x3]
        %v395 = vld [vmem:[#allocation10 + $0xc] sm:$0x3]
        %v396 = vld [vmem:[#allocation10 + $0xe] sm:$0x3]
        %397 = vmatpush.bf16.xpose.msra.mxu0 0
        %398 = vmatpush.bf16.xpose.msra.mxu0 0
        %399 = vmatpush.bf16.xpose.msra.mxu0 0
        %400 = vmatpush.bf16.xpose.msra.mxu0 0
        %401 = vmatpush.bf16.xpose.msra.mxu0 0
        %402 = vmatpush.bf16.xpose.msra.mxu0 0
        %403 = vmatpush.bf16.xpose.msra.mxu0 0
        %404 = vmatpush.bf16.xpose.msra.mxu0 %v365
        %405 = vmatmul.bf16.gmra.mxu0 %v364
        %v406 = vpop.f32.mrf.mxu0
        %v407 = vadd.f32 0.0, %v406
        %v408 = vpop.f32.mrf.mxu0
        %409 = vdwg.mxu0
        %410 = vmatpush.bf16.xpose.msra.mxu0 0
        %411 = vmatpush.bf16.xpose.msra.mxu0 0
        %412 = vmatpush.bf16.xpose.msra.mxu0 0
        %413 = vmatpush.bf16.xpose.msra.mxu0 0
        %414 = vmatpush.bf16.xpose.msra.mxu0 0
        %415 = vmatpush.bf16.xpose.msra.mxu0 0
        %416 = vmatpush.bf16.xpose.msra.mxu0 0
        %417 = vmatpush.bf16.xpose.msra.mxu0 %v366
        %418 = vmatmul.bf16.gmra.mxu0 %v364
        %v419 = vpop.f32.mrf.mxu0
        %v420 = vadd.f32 0.0, %v419
        %v421 = vpop.f32.mrf.mxu0
        %422 = vdwg.mxu0
        %423 = vmatpush.bf16.xpose.msra.mxu0 0
        %424 = vmatpush.bf16.xpose.msra.mxu0 0
        %425 = vmatpush.bf16.xpose.msra.mxu0 0
        %426 = vmatpush.bf16.xpose.msra.mxu0 0
        %427 = vmatpush.bf16.xpose.msra.mxu0 0
        %428 = vmatpush.bf16.xpose.msra.mxu0 0
        %429 = vmatpush.bf16.xpose.msra.mxu0 0
        %430 = vmatpush.bf16.xpose.msra.mxu0 %v367
        %431 = vmatmul.bf16.gmra.mxu0 %v364
        %v432 = vpop.f32.mrf.mxu0
        %v433 = vadd.f32 0.0, %v432
        %v434 = vpop.f32.mrf.mxu0
        %435 = vdwg.mxu0
        %436 = vmatpush.bf16.xpose.msra.mxu0 0
        %437 = vmatpush.bf16.xpose.msra.mxu0 0
        %438 = vmatpush.bf16.xpose.msra.mxu0 0
        %439 = vmatpush.bf16.xpose.msra.mxu0 0
        %440 = vmatpush.bf16.xpose.msra.mxu0 0
        %441 = vmatpush.bf16.xpose.msra.mxu0 0
        %442 = vmatpush.bf16.xpose.msra.mxu0 0
        %443 = vmatpush.bf16.xpose.msra.mxu0 %v368
        %444 = vmatmul.bf16.gmra.mxu0 %v364
        %v445 = vpop.f32.mrf.mxu0
        %v446 = vadd.f32 0.0, %v445
        %v447 = vpop.f32.mrf.mxu0
        %448 = vdwg.mxu0
        %449 = vmatpush.bf16.xpose.msra.mxu0 0
        %450 = vmatpush.bf16.xpose.msra.mxu0 0
        %451 = vmatpush.bf16.xpose.msra.mxu0 0
        %452 = vmatpush.bf16.xpose.msra.mxu0 0
        %453 = vmatpush.bf16.xpose.msra.mxu0 0
        %454 = vmatpush.bf16.xpose.msra.mxu0 0
        %455 = vmatpush.bf16.xpose.msra.mxu0 0
        %456 = vmatpush.bf16.xpose.msra.mxu0 %v369
        %457 = vmatmul.bf16.gmra.mxu0 %v364
        %v458 = vpop.f32.mrf.mxu0
        %v459 = vadd.f32 0.0, %v458
        %v460 = vpop.f32.mrf.mxu0
        %461 = vdwg.mxu0
        %462 = vmatpush.bf16.xpose.msra.mxu0 0
        %463 = vmatpush.bf16.xpose.msra.mxu0 0
        %464 = vmatpush.bf16.xpose.msra.mxu0 0
        %465 = vmatpush.bf16.xpose.msra.mxu0 0
        %466 = vmatpush.bf16.xpose.msra.mxu0 0
        %467 = vmatpush.bf16.xpose.msra.mxu0 0
        %468 = vmatpush.bf16.xpose.msra.mxu0 0
        %469 = vmatpush.bf16.xpose.msra.mxu0 %v370
        %470 = vmatmul.bf16.gmra.mxu0 %v364
        %v471 = vpop.f32.mrf.mxu0
        %v472 = vadd.f32 0.0, %v471
        %v473 = vpop.f32.mrf.mxu0
        %474 = vdwg.mxu0
        %475 = vmatpush.bf16.xpose.msra.mxu0 0
        %476 = vmatpush.bf16.xpose.msra.mxu0 0
        %477 = vmatpush.bf16.xpose.msra.mxu0 0
        %478 = vmatpush.bf16.xpose.msra.mxu0 0
        %479 = vmatpush.bf16.xpose.msra.mxu0 0
        %480 = vmatpush.bf16.xpose.msra.mxu0 0
        %481 = vmatpush.bf16.xpose.msra.mxu0 0
        %482 = vmatpush.bf16.xpose.msra.mxu0 %v371
        %483 = vmatmul.bf16.gmra.mxu0 %v364
        %v484 = vpop.f32.mrf.mxu0
        %v485 = vadd.f32 0.0, %v484
        %v486 = vpop.f32.mrf.mxu0
        %487 = vdwg.mxu0
        %488 = vmatpush.bf16.xpose.msra.mxu0 0
        %489 = vmatpush.bf16.xpose.msra.mxu0 0
        %490 = vmatpush.bf16.xpose.msra.mxu0 0
        %491 = vmatpush.bf16.xpose.msra.mxu0 0
        %492 = vmatpush.bf16.xpose.msra.mxu0 0
        %493 = vmatpush.bf16.xpose.msra.mxu0 0
        %494 = vmatpush.bf16.xpose.msra.mxu0 0
        %495 = vmatpush.bf16.xpose.msra.mxu0 %v372
        %496 = vmatmul.bf16.gmra.mxu0 %v364
        %v497 = vpop.f32.mrf.mxu0
        %v498 = vadd.f32 0.0, %v497
        %v499 = vpop.f32.mrf.mxu0
        %500 = vdwg.mxu0
        %501 = vmatpush.bf16.xpose.msra.mxu0 0
        %502 = vmatpush.bf16.xpose.msra.mxu0 0
        %503 = vmatpush.bf16.xpose.msra.mxu0 0
        %504 = vmatpush.bf16.xpose.msra.mxu0 0
        %505 = vmatpush.bf16.xpose.msra.mxu0 0
        %506 = vmatpush.bf16.xpose.msra.mxu0 0
        %507 = vmatpush.bf16.xpose.msra.mxu0 0
        %508 = vmatpush.bf16.xpose.msra.mxu0 %v373
        %509 = vmatmul.bf16.gmra.mxu0 %v364
        %v510 = vpop.f32.mrf.mxu0
        %v511 = vadd.f32 0.0, %v510
        %v512 = vpop.f32.mrf.mxu0
        %513 = vdwg.mxu0
        %514 = vmatpush.bf16.xpose.msra.mxu0 0
        %515 = vmatpush.bf16.xpose.msra.mxu0 0
        %516 = vmatpush.bf16.xpose.msra.mxu0 0
        %517 = vmatpush.bf16.xpose.msra.mxu0 0
        %518 = vmatpush.bf16.xpose.msra.mxu0 0
        %519 = vmatpush.bf16.xpose.msra.mxu0 0
        %520 = vmatpush.bf16.xpose.msra.mxu0 0
        %521 = vmatpush.bf16.xpose.msra.mxu0 %v374
        %522 = vmatmul.bf16.gmra.mxu0 %v364
        %v523 = vpop.f32.mrf.mxu0
        %v524 = vadd.f32 0.0, %v523
        %v525 = vpop.f32.mrf.mxu0
        %526 = vdwg.mxu0
        %527 = vmatpush.bf16.xpose.msra.mxu0 0
        %528 = vmatpush.bf16.xpose.msra.mxu0 0
        %529 = vmatpush.bf16.xpose.msra.mxu0 0
        %530 = vmatpush.bf16.xpose.msra.mxu0 0
        %531 = vmatpush.bf16.xpose.msra.mxu0 0
        %532 = vmatpush.bf16.xpose.msra.mxu0 0
        %533 = vmatpush.bf16.xpose.msra.mxu0 0
        %534 = vmatpush.bf16.xpose.msra.mxu0 %v375
        %535 = vmatmul.bf16.gmra.mxu0 %v364
        %v536 = vpop.f32.mrf.mxu0
        %v537 = vadd.f32 0.0, %v536
        %v538 = vpop.f32.mrf.mxu0
        %539 = vdwg.mxu0
        %540 = vmatpush.bf16.xpose.msra.mxu0 0
        %541 = vmatpush.bf16.xpose.msra.mxu0 0
        %542 = vmatpush.bf16.xpose.msra.mxu0 0
        %543 = vmatpush.bf16.xpose.msra.mxu0 0
        %544 = vmatpush.bf16.xpose.msra.mxu0 0
        %545 = vmatpush.bf16.xpose.msra.mxu0 0
        %546 = vmatpush.bf16.xpose.msra.mxu0 0
        %547 = vmatpush.bf16.xpose.msra.mxu0 %v376
        %548 = vmatmul.bf16.gmra.mxu0 %v364
        %v549 = vpop.f32.mrf.mxu0
        %v550 = vadd.f32 0.0, %v549
        %v551 = vpop.f32.mrf.mxu0
        %552 = vdwg.mxu0
        %553 = vmatpush.bf16.xpose.msra.mxu0 0
        %554 = vmatpush.bf16.xpose.msra.mxu0 0
        %555 = vmatpush.bf16.xpose.msra.mxu0 0
        %556 = vmatpush.bf16.xpose.msra.mxu0 0
        %557 = vmatpush.bf16.xpose.msra.mxu0 0
        %558 = vmatpush.bf16.xpose.msra.mxu0 0
        %559 = vmatpush.bf16.xpose.msra.mxu0 0
        %560 = vmatpush.bf16.xpose.msra.mxu0 %v377
        %561 = vmatmul.bf16.gmra.mxu0 %v364
        %v562 = vpop.f32.mrf.mxu0
        %v563 = vadd.f32 0.0, %v562
        %v564 = vpop.f32.mrf.mxu0
        %565 = vdwg.mxu0
        %566 = vmatpush.bf16.xpose.msra.mxu0 0
        %567 = vmatpush.bf16.xpose.msra.mxu0 0
        %568 = vmatpush.bf16.xpose.msra.mxu0 0
        %569 = vmatpush.bf16.xpose.msra.mxu0 0
        %570 = vmatpush.bf16.xpose.msra.mxu0 0
        %571 = vmatpush.bf16.xpose.msra.mxu0 0
        %572 = vmatpush.bf16.xpose.msra.mxu0 0
        %573 = vmatpush.bf16.xpose.msra.mxu0 %v378
        %574 = vmatmul.bf16.gmra.mxu0 %v364
        %v575 = vpop.f32.mrf.mxu0
        %v576 = vadd.f32 0.0, %v575
        %v577 = vpop.f32.mrf.mxu0
        %578 = vdwg.mxu0
        %579 = vmatpush.bf16.xpose.msra.mxu0 0
        %580 = vmatpush.bf16.xpose.msra.mxu0 0
        %581 = vmatpush.bf16.xpose.msra.mxu0 0
        %582 = vmatpush.bf16.xpose.msra.mxu0 0
        %583 = vmatpush.bf16.xpose.msra.mxu0 0
        %584 = vmatpush.bf16.xpose.msra.mxu0 0
        %585 = vmatpush.bf16.xpose.msra.mxu0 0
        %586 = vmatpush.bf16.xpose.msra.mxu0 %v379
        %587 = vmatmul.bf16.gmra.mxu0 %v364
        %v588 = vpop.f32.mrf.mxu0
        %v589 = vadd.f32 0.0, %v588
        %v590 = vpop.f32.mrf.mxu0
        %591 = vdwg.mxu0
        %592 = vmatpush.bf16.xpose.msra.mxu0 0
        %593 = vmatpush.bf16.xpose.msra.mxu0 0
        %594 = vmatpush.bf16.xpose.msra.mxu0 0
        %595 = vmatpush.bf16.xpose.msra.mxu0 0
        %596 = vmatpush.bf16.xpose.msra.mxu0 0
        %597 = vmatpush.bf16.xpose.msra.mxu0 0
        %598 = vmatpush.bf16.xpose.msra.mxu0 0
        %599 = vmatpush.bf16.xpose.msra.mxu0 %v380
        %600 = vmatmul.bf16.gmra.mxu0 %v364
        %v601 = vpop.f32.mrf.mxu0
        %v602 = vadd.f32 0.0, %v601
        %v603 = vpop.f32.mrf.mxu0
        %604 = vdwg.mxu0
        %605 = vmatpush.bf16.xpose.msra.mxu0 0
        %606 = vmatpush.bf16.xpose.msra.mxu0 0
        %607 = vmatpush.bf16.xpose.msra.mxu0 0
        %608 = vmatpush.bf16.xpose.msra.mxu0 0
        %609 = vmatpush.bf16.xpose.msra.mxu0 0
        %610 = vmatpush.bf16.xpose.msra.mxu0 0
        %611 = vmatpush.bf16.xpose.msra.mxu0 0
        %612 = vmatpush.bf16.xpose.msra.mxu0 %v381
        %613 = vmatmul.bf16.gmra.mxu0 %v364
        %v614 = vpop.f32.mrf.mxu0
        %v615 = vadd.f32 0.0, %v614
        %v616 = vpop.f32.mrf.mxu0
        %617 = vdwg.mxu0
        %618 = vmatpush.bf16.xpose.msra.mxu0 0
        %619 = vmatpush.bf16.xpose.msra.mxu0 0
        %620 = vmatpush.bf16.xpose.msra.mxu0 0
        %621 = vmatpush.bf16.xpose.msra.mxu0 0
        %622 = vmatpush.bf16.xpose.msra.mxu0 0
        %623 = vmatpush.bf16.xpose.msra.mxu0 0
        %624 = vmatpush.bf16.xpose.msra.mxu0 0
        %625 = vmatpush.bf16.xpose.msra.mxu0 %v382
        %626 = vmatmul.bf16.gmra.mxu0 %v364
        %v627 = vpop.f32.mrf.mxu0
        %v628 = vadd.f32 0.0, %v627
        %v629 = vpop.f32.mrf.mxu0
        %630 = vdwg.mxu0
        %631 = vmatpush.bf16.xpose.msra.mxu0 0
        %632 = vmatpush.bf16.xpose.msra.mxu0 0
        %633 = vmatpush.bf16.xpose.msra.mxu0 0
        %634 = vmatpush.bf16.xpose.msra.mxu0 0
        %635 = vmatpush.bf16.xpose.msra.mxu0 0
        %636 = vmatpush.bf16.xpose.msra.mxu0 0
        %637 = vmatpush.bf16.xpose.msra.mxu0 0
        %638 = vmatpush.bf16.xpose.msra.mxu0 %v383
        %639 = vmatmul.bf16.gmra.mxu0 %v364
        %v640 = vpop.f32.mrf.mxu0
        %v641 = vadd.f32 0.0, %v640
        %v642 = vpop.f32.mrf.mxu0
        %643 = vdwg.mxu0
        %644 = vmatpush.bf16.xpose.msra.mxu0 0
        %645 = vmatpush.bf16.xpose.msra.mxu0 0
        %646 = vmatpush.bf16.xpose.msra.mxu0 0
        %647 = vmatpush.bf16.xpose.msra.mxu0 0
        %648 = vmatpush.bf16.xpose.msra.mxu0 0
        %649 = vmatpush.bf16.xpose.msra.mxu0 0
        %650 = vmatpush.bf16.xpose.msra.mxu0 0
        %651 = vmatpush.bf16.xpose.msra.mxu0 %v384
        %652 = vmatmul.bf16.gmra.mxu0 %v364
        %v653 = vpop.f32.mrf.mxu0
        %v654 = vadd.f32 0.0, %v653
        %v655 = vpop.f32.mrf.mxu0
        %656 = vdwg.mxu0
        %657 = vmatpush.bf16.xpose.msra.mxu0 0
        %658 = vmatpush.bf16.xpose.msra.mxu0 0
        %659 = vmatpush.bf16.xpose.msra.mxu0 0
        %660 = vmatpush.bf16.xpose.msra.mxu0 0
        %661 = vmatpush.bf16.xpose.msra.mxu0 0
        %662 = vmatpush.bf16.xpose.msra.mxu0 0
        %663 = vmatpush.bf16.xpose.msra.mxu0 0
        %664 = vmatpush.bf16.xpose.msra.mxu0 %v385
        %665 = vmatmul.bf16.gmra.mxu0 %v364
        %v666 = vpop.f32.mrf.mxu0
        %v667 = vadd.f32 0.0, %v666
        %v668 = vpop.f32.mrf.mxu0
        %669 = vdwg.mxu0
        %670 = vmatpush.bf16.xpose.msra.mxu0 0
        %671 = vmatpush.bf16.xpose.msra.mxu0 0
        %672 = vmatpush.bf16.xpose.msra.mxu0 0
        %673 = vmatpush.bf16.xpose.msra.mxu0 0
        %674 = vmatpush.bf16.xpose.msra.mxu0 0
        %675 = vmatpush.bf16.xpose.msra.mxu0 0
        %676 = vmatpush.bf16.xpose.msra.mxu0 0
        %677 = vmatpush.bf16.xpose.msra.mxu0 %v386
        %678 = vmatmul.bf16.gmra.mxu0 %v364
        %v679 = vpop.f32.mrf.mxu0
        %v680 = vadd.f32 0.0, %v679
        %v681 = vpop.f32.mrf.mxu0
        %682 = vdwg.mxu0
        %683 = vmatpush.bf16.xpose.msra.mxu0 0
        %684 = vmatpush.bf16.xpose.msra.mxu0 0
        %685 = vmatpush.bf16.xpose.msra.mxu0 0
        %686 = vmatpush.bf16.xpose.msra.mxu0 0
        %687 = vmatpush.bf16.xpose.msra.mxu0 0
        %688 = vmatpush.bf16.xpose.msra.mxu0 0
        %689 = vmatpush.bf16.xpose.msra.mxu0 0
        %690 = vmatpush.bf16.xpose.msra.mxu0 %v387
        %691 = vmatmul.bf16.gmra.mxu0 %v364
        %v692 = vpop.f32.mrf.mxu0
        %v693 = vadd.f32 0.0, %v692
        %v694 = vpop.f32.mrf.mxu0
        %695 = vdwg.mxu0
        %696 = vmatpush.bf16.xpose.msra.mxu0 0
        %697 = vmatpush.bf16.xpose.msra.mxu0 0
        %698 = vmatpush.bf16.xpose.msra.mxu0 0
        %699 = vmatpush.bf16.xpose.msra.mxu0 0
        %700 = vmatpush.bf16.xpose.msra.mxu0 0
        %701 = vmatpush.bf16.xpose.msra.mxu0 0
        %702 = vmatpush.bf16.xpose.msra.mxu0 0
        %703 = vmatpush.bf16.xpose.msra.mxu0 %v388
        %704 = vmatmul.bf16.gmra.mxu0 %v364
        %v705 = vpop.f32.mrf.mxu0
        %v706 = vadd.f32 0.0, %v705
        %v707 = vpop.f32.mrf.mxu0
        %708 = vdwg.mxu0
        %v709 = vpack.c.bf16 %v407, %v407
        %v710 = vpack.c.bf16 %v420, %v420
        %v711 = vpack.c.bf16 %v433, %v433
        %v712 = vpack.c.bf16 %v446, %v446
        %v713 = vpack.c.bf16 %v459, %v459
        %v714 = vpack.c.bf16 %v472, %v472
        %v715 = vpack.c.bf16 %v485, %v485
        %v716 = vpack.c.bf16 %v498, %v498
        %v717 = vpack.c.bf16 %v511, %v511
        %v718 = vpack.c.bf16 %v524, %v524
        %v719 = vpack.c.bf16 %v537, %v537
        %v720 = vpack.c.bf16 %v550, %v550
        %v721 = vpack.c.bf16 %v563, %v563
        %v722 = vpack.c.bf16 %v576, %v576
        %v723 = vpack.c.bf16 %v589, %v589
        %v724 = vpack.c.bf16 %v602, %v602
        %v725 = vpack.c.bf16 %v615, %v615
        %v726 = vpack.c.bf16 %v628, %v628
        %v727 = vpack.c.bf16 %v641, %v641
        %v728 = vpack.c.bf16 %v654, %v654
        %v729 = vpack.c.bf16 %v667, %v667
        %v730 = vpack.c.bf16 %v680, %v680
        %v731 = vpack.c.bf16 %v693, %v693
        %v732 = vpack.c.bf16 %v706, %v706
        %vm733 = vcmask 31744
        %v735 = vsel %vm733, %v709, 0
        %v738 = vsel %vm733, %v717, 0
        %740 = vmatpush.bf16.xpose.msra.mxu0 0
        %741 = vmatpush.bf16.xpose.msra.mxu0 0
        %742 = vmatpush.bf16.xpose.msra.mxu0 0
        %743 = vmatpush.bf16.xpose.msra.mxu0 0
        %744 = vmatpush.bf16.xpose.msra.mxu0 0
        %745 = vmatpush.bf16.xpose.msra.mxu0 0
        %746 = vmatpush.bf16.xpose.msra.mxu0 0
        %747 = vmatpush.bf16.xpose.msra.mxu0 %v738
        %748 = vmatmul.bf16.gmra.mxu0 %v735
        %v749 = vpop.f32.mrf.mxu0
        %v750 = vadd.f32 0.0, %v749
        %v751 = vpop.f32.mrf.mxu0
        %752 = vdwg.mxu0
        %v754 = vsel %vm733, %v710, 0
        %v757 = vsel %vm733, %v718, 0
        %759 = vmatpush.bf16.xpose.msra.mxu0 0
        %760 = vmatpush.bf16.xpose.msra.mxu0 0
        %761 = vmatpush.bf16.xpose.msra.mxu0 0
        %762 = vmatpush.bf16.xpose.msra.mxu0 0
        %763 = vmatpush.bf16.xpose.msra.mxu0 0
        %764 = vmatpush.bf16.xpose.msra.mxu0 0
        %765 = vmatpush.bf16.xpose.msra.mxu0 0
        %766 = vmatpush.bf16.xpose.msra.mxu0 %v757
        %767 = vmatmul.bf16.gmra.mxu0 %v754
        %v768 = vpop.f32.mrf.mxu0
        %v769 = vadd.f32 0.0, %v768
        %v770 = vpop.f32.mrf.mxu0
        %771 = vdwg.mxu0
        %v773 = vsel %vm733, %v711, 0
        %v776 = vsel %vm733, %v719, 0
        %778 = vmatpush.bf16.xpose.msra.mxu0 0
        %779 = vmatpush.bf16.xpose.msra.mxu0 0
        %780 = vmatpush.bf16.xpose.msra.mxu0 0
        %781 = vmatpush.bf16.xpose.msra.mxu0 0
        %782 = vmatpush.bf16.xpose.msra.mxu0 0
        %783 = vmatpush.bf16.xpose.msra.mxu0 0
        %784 = vmatpush.bf16.xpose.msra.mxu0 0
        %785 = vmatpush.bf16.xpose.msra.mxu0 %v776
        %786 = vmatmul.bf16.gmra.mxu0 %v773
        %v787 = vpop.f32.mrf.mxu0
        %v788 = vadd.f32 0.0, %v787
        %v789 = vpop.f32.mrf.mxu0
        %790 = vdwg.mxu0
        %v792 = vsel %vm733, %v712, 0
        %v795 = vsel %vm733, %v720, 0
        %797 = vmatpush.bf16.xpose.msra.mxu0 0
        %798 = vmatpush.bf16.xpose.msra.mxu0 0
        %799 = vmatpush.bf16.xpose.msra.mxu0 0
        %800 = vmatpush.bf16.xpose.msra.mxu0 0
        %801 = vmatpush.bf16.xpose.msra.mxu0 0
        %802 = vmatpush.bf16.xpose.msra.mxu0 0
        %803 = vmatpush.bf16.xpose.msra.mxu0 0
        %804 = vmatpush.bf16.xpose.msra.mxu0 %v795
        %805 = vmatmul.bf16.gmra.mxu0 %v792
        %v806 = vpop.f32.mrf.mxu0
        %v807 = vadd.f32 0.0, %v806
        %v808 = vpop.f32.mrf.mxu0
        %809 = vdwg.mxu0
        %v811 = vsel %vm733, %v713, 0
        %v814 = vsel %vm733, %v721, 0
        %816 = vmatpush.bf16.xpose.msra.mxu0 0
        %817 = vmatpush.bf16.xpose.msra.mxu0 0
        %818 = vmatpush.bf16.xpose.msra.mxu0 0
        %819 = vmatpush.bf16.xpose.msra.mxu0 0
        %820 = vmatpush.bf16.xpose.msra.mxu0 0
        %821 = vmatpush.bf16.xpose.msra.mxu0 0
        %822 = vmatpush.bf16.xpose.msra.mxu0 0
        %823 = vmatpush.bf16.xpose.msra.mxu0 %v814
        %824 = vmatmul.bf16.gmra.mxu0 %v811
        %v825 = vpop.f32.mrf.mxu0
        %v826 = vadd.f32 0.0, %v825
        %v827 = vpop.f32.mrf.mxu0
        %828 = vdwg.mxu0
        %v830 = vsel %vm733, %v714, 0
        %v833 = vsel %vm733, %v722, 0
        %835 = vmatpush.bf16.xpose.msra.mxu0 0
        %836 = vmatpush.bf16.xpose.msra.mxu0 0
        %837 = vmatpush.bf16.xpose.msra.mxu0 0
        %838 = vmatpush.bf16.xpose.msra.mxu0 0
        %839 = vmatpush.bf16.xpose.msra.mxu0 0
        %840 = vmatpush.bf16.xpose.msra.mxu0 0
        %841 = vmatpush.bf16.xpose.msra.mxu0 0
        %842 = vmatpush.bf16.xpose.msra.mxu0 %v833
        %843 = vmatmul.bf16.gmra.mxu0 %v830
        %v844 = vpop.f32.mrf.mxu0
        %v845 = vadd.f32 0.0, %v844
        %v846 = vpop.f32.mrf.mxu0
        %847 = vdwg.mxu0
        %v849 = vsel %vm733, %v715, 0
        %v852 = vsel %vm733, %v723, 0
        %854 = vmatpush.bf16.xpose.msra.mxu0 0
        %855 = vmatpush.bf16.xpose.msra.mxu0 0
        %856 = vmatpush.bf16.xpose.msra.mxu0 0
        %857 = vmatpush.bf16.xpose.msra.mxu0 0
        %858 = vmatpush.bf16.xpose.msra.mxu0 0
        %859 = vmatpush.bf16.xpose.msra.mxu0 0
        %860 = vmatpush.bf16.xpose.msra.mxu0 0
        %861 = vmatpush.bf16.xpose.msra.mxu0 %v852
        %862 = vmatmul.bf16.gmra.mxu0 %v849
        %v863 = vpop.f32.mrf.mxu0
        %v864 = vadd.f32 0.0, %v863
        %v865 = vpop.f32.mrf.mxu0
        %866 = vdwg.mxu0
        %v868 = vsel %vm733, %v716, 0
        %v871 = vsel %vm733, %v724, 0
        %873 = vmatpush.bf16.xpose.msra.mxu0 0
        %874 = vmatpush.bf16.xpose.msra.mxu0 0
        %875 = vmatpush.bf16.xpose.msra.mxu0 0
        %876 = vmatpush.bf16.xpose.msra.mxu0 0
        %877 = vmatpush.bf16.xpose.msra.mxu0 0
        %878 = vmatpush.bf16.xpose.msra.mxu0 0
        %879 = vmatpush.bf16.xpose.msra.mxu0 0
        %880 = vmatpush.bf16.xpose.msra.mxu0 %v871
        %881 = vmatmul.bf16.gmra.mxu0 %v868
        %v882 = vpop.f32.mrf.mxu0
        %v883 = vadd.f32 0.0, %v882
        %v884 = vpop.f32.mrf.mxu0
        %885 = vdwg.mxu0
        %vm886 = vcmask 64512
        %v887 = vsel %vm886, %v750, -inf
        %888 = vmax.xlane.f32.xlu0 %v887
        %v889 = vpop.xlane.xlu0 %888
        %v890 = vsel %vm886, %v769, -inf
        %891 = vmax.xlane.f32.xlu0 %v890
        %v892 = vpop.xlane.xlu0 %891
        %v893 = vsel %vm886, %v788, -inf
        %894 = vmax.xlane.f32.xlu0 %v893
        %v895 = vpop.xlane.xlu0 %894
        %v896 = vsel %vm886, %v807, -inf
        %897 = vmax.xlane.f32.xlu0 %v896
        %v898 = vpop.xlane.xlu0 %897
        %v899 = vsel %vm886, %v826, -inf
        %900 = vmax.xlane.f32.xlu0 %v899
        %v901 = vpop.xlane.xlu0 %900
        %v902 = vsel %vm886, %v845, -inf
        %903 = vmax.xlane.f32.xlu0 %v902
        %v904 = vpop.xlane.xlu0 %903
        %v905 = vsel %vm886, %v864, -inf
        %906 = vmax.xlane.f32.xlu0 %v905
        %v907 = vpop.xlane.xlu0 %906
        %v908 = vsel %vm886, %v883, -inf
        %909 = vmax.xlane.f32.xlu0 %v908
        %v910 = vpop.xlane.xlu0 %909
        %v911 = vsub.f32 %v750, %v889
        %v912 = vsub.f32 %v769, %v892
        %v913 = vsub.f32 %v788, %v895
        %v914 = vsub.f32 %v807, %v898
        %v915 = vsub.f32 %v826, %v901
        %v916 = vsub.f32 %v845, %v904
        %v917 = vsub.f32 %v864, %v907
        %v918 = vsub.f32 %v883, %v910
        %v919 = vmul.f32 %v911, 1.442695
        %v920 = vpow.pop %v919
        %v921 = vmul.f32 %v912, 1.442695
        %v922 = vpow.pop %v921
        %v923 = vmul.f32 %v913, 1.442695
        %v924 = vpow.pop %v923
        %v925 = vmul.f32 %v914, 1.442695
        %v926 = vpow.pop %v925
        %v927 = vmul.f32 %v915, 1.442695
        %v928 = vpow.pop %v927
        %v929 = vmul.f32 %v916, 1.442695
        %v930 = vpow.pop %v929
        %v931 = vmul.f32 %v917, 1.442695
        %v932 = vpow.pop %v931
        %v933 = vmul.f32 %v918, 1.442695
        %v934 = vpow.pop %v933
        %v935 = vsel %vm886, %v920, 0.0
        %936 = vadd.xlane.f32.xlu0 %v935
        %v937 = vpop.xlane.xlu0 %936
        %v938 = vsel %vm886, %v922, 0.0
        %939 = vadd.xlane.f32.xlu0 %v938
        %v940 = vpop.xlane.xlu0 %939
        %v941 = vsel %vm886, %v924, 0.0
        %942 = vadd.xlane.f32.xlu0 %v941
        %v943 = vpop.xlane.xlu0 %942
        %v944 = vsel %vm886, %v926, 0.0
        %945 = vadd.xlane.f32.xlu0 %v944
        %v946 = vpop.xlane.xlu0 %945
        %v947 = vsel %vm886, %v928, 0.0
        %948 = vadd.xlane.f32.xlu0 %v947
        %v949 = vpop.xlane.xlu0 %948
        %v950 = vsel %vm886, %v930, 0.0
        %951 = vadd.xlane.f32.xlu0 %v950
        %v952 = vpop.xlane.xlu0 %951
        %v953 = vsel %vm886, %v932, 0.0
        %954 = vadd.xlane.f32.xlu0 %v953
        %v955 = vpop.xlane.xlu0 %954
        %v956 = vsel %vm886, %v934, 0.0
        %957 = vadd.xlane.f32.xlu0 %v956
        %v958 = vpop.xlane.xlu0 %957
        %v959 = vrcp.pop %v937
        %v960 = vrcp.pop %v940
        %v961 = vrcp.pop %v943
        %v962 = vrcp.pop %v946
        %v963 = vrcp.pop %v949
        %v964 = vrcp.pop %v952
        %v965 = vrcp.pop %v955
        %v966 = vrcp.pop %v958
        %v967 = vmul.f32 %v920, %v959
        %v968 = vmul.f32 %v922, %v960
        %v969 = vmul.f32 %v924, %v961
        %v970 = vmul.f32 %v926, %v962
        %v971 = vmul.f32 %v928, %v963
        %v972 = vmul.f32 %v930, %v964
        %v973 = vmul.f32 %v932, %v965
        %v974 = vmul.f32 %v934, %v966
        %v975 = vpack.c.bf16 %v967, %v967
        %v976 = vpack.c.bf16 %v968, %v968
        %v977 = vpack.c.bf16 %v969, %v969
        %v978 = vpack.c.bf16 %v970, %v970
        %v979 = vpack.c.bf16 %v971, %v971
        %v980 = vpack.c.bf16 %v972, %v972
        %v981 = vpack.c.bf16 %v973, %v973
        %v982 = vpack.c.bf16 %v974, %v974
        %v984 = vsel %vm886, %v975, 0
        %vm986 = vcmask 1043456
        %v988 = vsel %vm986, %v725, 0
        %990 = vmatpush.bf16.msra.mxu0 0
        %991 = vmatpush.bf16.msra.mxu0 0
        %992 = vmatpush.bf16.msra.mxu0 0
        %993 = vmatpush.bf16.msra.mxu0 0
        %994 = vmatpush.bf16.msra.mxu0 0
        %995 = vmatpush.bf16.msra.mxu0 0
        %996 = vmatpush.bf16.msra.mxu0 0
        %997 = vmatpush.bf16.msra.mxu0 %v988
        %998 = vmatmul.bf16.gmra.mxu0 %v984
        %v999 = vpop.f32.mrf.mxu0
        %v1000 = vadd.f32 0.0, %v999
        %v1001 = vpop.f32.mrf.mxu0
        %1002 = vdwg.mxu0
        %v1004 = vsel %vm886, %v976, 0
        %v1007 = vsel %vm986, %v726, 0
        %1009 = vmatpush.bf16.msra.mxu0 0
        %1010 = vmatpush.bf16.msra.mxu0 0
        %1011 = vmatpush.bf16.msra.mxu0 0
        %1012 = vmatpush.bf16.msra.mxu0 0
        %1013 = vmatpush.bf16.msra.mxu0 0
        %1014 = vmatpush.bf16.msra.mxu0 0
        %1015 = vmatpush.bf16.msra.mxu0 0
        %1016 = vmatpush.bf16.msra.mxu0 %v1007
        %1017 = vmatmul.bf16.gmra.mxu0 %v1004
        %v1018 = vpop.f32.mrf.mxu0
        %v1019 = vadd.f32 0.0, %v1018
        %v1020 = vpop.f32.mrf.mxu0
        %1021 = vdwg.mxu0
        %v1023 = vsel %vm886, %v977, 0
        %v1026 = vsel %vm986, %v727, 0
        %1028 = vmatpush.bf16.msra.mxu0 0
        %1029 = vmatpush.bf16.msra.mxu0 0
        %1030 = vmatpush.bf16.msra.mxu0 0
        %1031 = vmatpush.bf16.msra.mxu0 0
        %1032 = vmatpush.bf16.msra.mxu0 0
        %1033 = vmatpush.bf16.msra.mxu0 0
        %1034 = vmatpush.bf16.msra.mxu0 0
        %1035 = vmatpush.bf16.msra.mxu0 %v1026
        %1036 = vmatmul.bf16.gmra.mxu0 %v1023
        %v1037 = vpop.f32.mrf.mxu0
        %v1038 = vadd.f32 0.0, %v1037
        %v1039 = vpop.f32.mrf.mxu0
        %1040 = vdwg.mxu0
        %v1042 = vsel %vm886, %v978, 0
        %v1045 = vsel %vm986, %v728, 0
        %1047 = vmatpush.bf16.msra.mxu0 0
        %1048 = vmatpush.bf16.msra.mxu0 0
        %1049 = vmatpush.bf16.msra.mxu0 0
        %1050 = vmatpush.bf16.msra.mxu0 0
        %1051 = vmatpush.bf16.msra.mxu0 0
        %1052 = vmatpush.bf16.msra.mxu0 0
        %1053 = vmatpush.bf16.msra.mxu0 0
        %1054 = vmatpush.bf16.msra.mxu0 %v1045
        %1055 = vmatmul.bf16.gmra.mxu0 %v1042
        %v1056 = vpop.f32.mrf.mxu0
        %v1057 = vadd.f32 0.0, %v1056
        %v1058 = vpop.f32.mrf.mxu0
        %1059 = vdwg.mxu0
        %v1061 = vsel %vm886, %v979, 0
        %v1064 = vsel %vm986, %v729, 0
        %1066 = vmatpush.bf16.msra.mxu0 0
        %1067 = vmatpush.bf16.msra.mxu0 0
        %1068 = vmatpush.bf16.msra.mxu0 0
        %1069 = vmatpush.bf16.msra.mxu0 0
        %1070 = vmatpush.bf16.msra.mxu0 0
        %1071 = vmatpush.bf16.msra.mxu0 0
        %1072 = vmatpush.bf16.msra.mxu0 0
        %1073 = vmatpush.bf16.msra.mxu0 %v1064
        %1074 = vmatmul.bf16.gmra.mxu0 %v1061
        %v1075 = vpop.f32.mrf.mxu0
        %v1076 = vadd.f32 0.0, %v1075
        %v1077 = vpop.f32.mrf.mxu0
        %1078 = vdwg.mxu0
        %v1080 = vsel %vm886, %v980, 0
        %v1083 = vsel %vm986, %v730, 0
        %1085 = vmatpush.bf16.msra.mxu0 0
        %1086 = vmatpush.bf16.msra.mxu0 0
        %1087 = vmatpush.bf16.msra.mxu0 0
        %1088 = vmatpush.bf16.msra.mxu0 0
        %1089 = vmatpush.bf16.msra.mxu0 0
        %1090 = vmatpush.bf16.msra.mxu0 0
        %1091 = vmatpush.bf16.msra.mxu0 0
        %1092 = vmatpush.bf16.msra.mxu0 %v1083
        %1093 = vmatmul.bf16.gmra.mxu0 %v1080
        %v1094 = vpop.f32.mrf.mxu0
        %v1095 = vadd.f32 0.0, %v1094
        %v1096 = vpop.f32.mrf.mxu0
        %1097 = vdwg.mxu0
        %v1099 = vsel %vm886, %v981, 0
        %v1102 = vsel %vm986, %v731, 0
        %1104 = vmatpush.bf16.msra.mxu0 0
        %1105 = vmatpush.bf16.msra.mxu0 0
        %1106 = vmatpush.bf16.msra.mxu0 0
        %1107 = vmatpush.bf16.msra.mxu0 0
        %1108 = vmatpush.bf16.msra.mxu0 0
        %1109 = vmatpush.bf16.msra.mxu0 0
        %1110 = vmatpush.bf16.msra.mxu0 0
        %1111 = vmatpush.bf16.msra.mxu0 %v1102
        %1112 = vmatmul.bf16.gmra.mxu0 %v1099
        %v1113 = vpop.f32.mrf.mxu0
        %v1114 = vadd.f32 0.0, %v1113
        %v1115 = vpop.f32.mrf.mxu0
        %1116 = vdwg.mxu0
        %v1118 = vsel %vm886, %v982, 0
        %v1121 = vsel %vm986, %v732, 0
        %1123 = vmatpush.bf16.msra.mxu0 0
        %1124 = vmatpush.bf16.msra.mxu0 0
        %1125 = vmatpush.bf16.msra.mxu0 0
        %1126 = vmatpush.bf16.msra.mxu0 0
        %1127 = vmatpush.bf16.msra.mxu0 0
        %1128 = vmatpush.bf16.msra.mxu0 0
        %1129 = vmatpush.bf16.msra.mxu0 0
        %1130 = vmatpush.bf16.msra.mxu0 %v1121
        %1131 = vmatmul.bf16.gmra.mxu0 %v1118
        %v1132 = vpop.f32.mrf.mxu0
        %v1133 = vadd.f32 0.0, %v1132
        %v1134 = vpop.f32.mrf.mxu0
        %1135 = vdwg.mxu0
        %v1136 = vpack.c.bf16 %v1000, %v1000
        %v1137 = vpack.c.bf16 %v1019, %v1019
        %v1138 = vpack.c.bf16 %v1038, %v1038
        %v1139 = vpack.c.bf16 %v1057, %v1057
        %v1140 = vpack.c.bf16 %v1076, %v1076
        %v1141 = vpack.c.bf16 %v1095, %v1095
        %v1142 = vpack.c.bf16 %v1114, %v1114
        %v1143 = vpack.c.bf16 %v1133, %v1133
        %v1145 = vsel %vm733, %v1136, 0
        %vm1147 = vcmask 1041408
        %v1149 = vsel %vm1147, %v389, 0
        %1151 = vmatpush.bf16.msra.mxu0 0
        %1152 = vmatpush.bf16.msra.mxu0 0
        %1153 = vmatpush.bf16.msra.mxu0 0
        %1154 = vmatpush.bf16.msra.mxu0 0
        %1155 = vmatpush.bf16.msra.mxu0 0
        %1156 = vmatpush.bf16.msra.mxu0 0
        %1157 = vmatpush.bf16.msra.mxu0 0
        %1158 = vmatpush.bf16.msra.mxu0 %v1149
        %1159 = vmatmul.bf16.gmra.mxu0 %v1145
        %v1160 = vpop.f32.mrf.mxu0
        %v1161 = vadd.f32 0.0, %v1160
        %v1162 = vpop.f32.mrf.mxu0
        %1163 = vdwg.mxu0
        %v1165 = vsel %vm733, %v1137, 0
        %v1168 = vsel %vm1147, %v390, 0
        %1170 = vmatpush.bf16.msra.mxu0 0
        %1171 = vmatpush.bf16.msra.mxu0 0
        %1172 = vmatpush.bf16.msra.mxu0 0
        %1173 = vmatpush.bf16.msra.mxu0 0
        %1174 = vmatpush.bf16.msra.mxu0 0
        %1175 = vmatpush.bf16.msra.mxu0 0
        %1176 = vmatpush.bf16.msra.mxu0 0
        %1177 = vmatpush.bf16.msra.mxu0 %v1168
        %1178 = vmatmul.bf16.gmra.mxu0 %v1165
        %v1179 = vpop.f32.mrf.mxu0
        %v1180 = vadd.f32 0.0, %v1179
        %v1181 = vpop.f32.mrf.mxu0
        %1182 = vdwg.mxu0
        %v1184 = vsel %vm733, %v1138, 0
        %v1187 = vsel %vm1147, %v391, 0
        %1189 = vmatpush.bf16.msra.mxu0 0
        %1190 = vmatpush.bf16.msra.mxu0 0
        %1191 = vmatpush.bf16.msra.mxu0 0
        %1192 = vmatpush.bf16.msra.mxu0 0
        %1193 = vmatpush.bf16.msra.mxu0 0
        %1194 = vmatpush.bf16.msra.mxu0 0
        %1195 = vmatpush.bf16.msra.mxu0 0
        %1196 = vmatpush.bf16.msra.mxu0 %v1187
        %1197 = vmatmul.bf16.gmra.mxu0 %v1184
        %v1198 = vpop.f32.mrf.mxu0
        %v1199 = vadd.f32 0.0, %v1198
        %v1200 = vpop.f32.mrf.mxu0
        %1201 = vdwg.mxu0
        %v1203 = vsel %vm733, %v1139, 0
        %v1206 = vsel %vm1147, %v392, 0
        %1208 = vmatpush.bf16.msra.mxu0 0
        %1209 = vmatpush.bf16.msra.mxu0 0
        %1210 = vmatpush.bf16.msra.mxu0 0
        %1211 = vmatpush.bf16.msra.mxu0 0
        %1212 = vmatpush.bf16.msra.mxu0 0
        %1213 = vmatpush.bf16.msra.mxu0 0
        %1214 = vmatpush.bf16.msra.mxu0 0
        %1215 = vmatpush.bf16.msra.mxu0 %v1206
        %1216 = vmatmul.bf16.gmra.mxu0 %v1203
        %v1217 = vpop.f32.mrf.mxu0
        %v1218 = vadd.f32 0.0, %v1217
        %v1219 = vpop.f32.mrf.mxu0
        %1220 = vdwg.mxu0
        %v1222 = vsel %vm733, %v1140, 0
        %v1225 = vsel %vm1147, %v393, 0
        %1227 = vmatpush.bf16.msra.mxu0 0
        %1228 = vmatpush.bf16.msra.mxu0 0
        %1229 = vmatpush.bf16.msra.mxu0 0
        %1230 = vmatpush.bf16.msra.mxu0 0
        %1231 = vmatpush.bf16.msra.mxu0 0
        %1232 = vmatpush.bf16.msra.mxu0 0
        %1233 = vmatpush.bf16.msra.mxu0 0
        %1234 = vmatpush.bf16.msra.mxu0 %v1225
        %1235 = vmatmul.bf16.gmra.mxu0 %v1222
        %v1236 = vpop.f32.mrf.mxu0
        %v1237 = vadd.f32 0.0, %v1236
        %v1238 = vpop.f32.mrf.mxu0
        %1239 = vdwg.mxu0
        %v1241 = vsel %vm733, %v1141, 0
        %v1244 = vsel %vm1147, %v394, 0
        %1246 = vmatpush.bf16.msra.mxu0 0
        %1247 = vmatpush.bf16.msra.mxu0 0
        %1248 = vmatpush.bf16.msra.mxu0 0
        %1249 = vmatpush.bf16.msra.mxu0 0
        %1250 = vmatpush.bf16.msra.mxu0 0
        %1251 = vmatpush.bf16.msra.mxu0 0
        %1252 = vmatpush.bf16.msra.mxu0 0
        %1253 = vmatpush.bf16.msra.mxu0 %v1244
        %1254 = vmatmul.bf16.gmra.mxu0 %v1241
        %v1255 = vpop.f32.mrf.mxu0
        %v1256 = vadd.f32 0.0, %v1255
        %v1257 = vpop.f32.mrf.mxu0
        %1258 = vdwg.mxu0
        %v1260 = vsel %vm733, %v1142, 0
        %v1263 = vsel %vm1147, %v395, 0
        %1265 = vmatpush.bf16.msra.mxu0 0
        %1266 = vmatpush.bf16.msra.mxu0 0
        %1267 = vmatpush.bf16.msra.mxu0 0
        %1268 = vmatpush.bf16.msra.mxu0 0
        %1269 = vmatpush.bf16.msra.mxu0 0
        %1270 = vmatpush.bf16.msra.mxu0 0
        %1271 = vmatpush.bf16.msra.mxu0 0
        %1272 = vmatpush.bf16.msra.mxu0 %v1263
        %1273 = vmatmul.bf16.gmra.mxu0 %v1260
        %v1274 = vpop.f32.mrf.mxu0
        %v1275 = vadd.f32 0.0, %v1274
        %v1276 = vpop.f32.mrf.mxu0
        %1277 = vdwg.mxu0
        %v1279 = vsel %vm733, %v1143, 0
        %v1282 = vsel %vm1147, %v396, 0
        %1284 = vmatpush.bf16.msra.mxu0 0
        %1285 = vmatpush.bf16.msra.mxu0 0
        %1286 = vmatpush.bf16.msra.mxu0 0
        %1287 = vmatpush.bf16.msra.mxu0 0
        %1288 = vmatpush.bf16.msra.mxu0 0
        %1289 = vmatpush.bf16.msra.mxu0 0
        %1290 = vmatpush.bf16.msra.mxu0 0
        %1291 = vmatpush.bf16.msra.mxu0 %v1282
        %1292 = vmatmul.bf16.gmra.mxu0 %v1279
        %v1293 = vpop.f32.mrf.mxu0
        %v1294 = vadd.f32 0.0, %v1293
        %v1295 = vpop.f32.mrf.mxu0
        %1296 = vdwg.mxu0
        %v1297 = vadd.f32 %v1161, %v1180
        %v1298 = vadd.f32 %v1297, %v1199
        %v1299 = vadd.f32 %v1298, %v1218
        %v1300 = vadd.f32 %v1299, %v1237
        %v1301 = vadd.f32 %v1300, %v1256
        %v1302 = vadd.f32 %v1301, %v1275
        %v1303 = vadd.f32 %v1302, %v1294
        %v1304 = vadd.f32 %v1303, %v363
        %1305 = vadd.xlane.f32.xlu0 %v1304
        %v1306 = vpop.xlane.xlu0 %1305
        %v1307 = vmul.f32 %v1306, 0.03125
        %v1308 = vmul.f32 %v1304, %v1304
        %1309 = vadd.xlane.f32.xlu0 %v1308
        %v1310 = vpop.xlane.xlu0 %1309
        %v1311 = vmul.f32 %v1310, 0.03125
        %v1312 = vsub.f32 %v1304, %v1307
        %v1313 = vmul.f32 %v1307, %v1307
        %v1314 = vsub.f32 %v1311, %v1313
        %v1315 = vadd.f32 %v1314, 1e-05
        %v1316 = vrsqrt.pop %v1315
        %v1317 = vmul.f32 %v1316, %v1315
        %v1318 = vmul.f32 %v1317, %v1316
        %v1319 = vmul.f32 0.5, %v1318
        %v1320 = vsub.f32 1.5, %v1319
        %v1321 = vmul.f32 %v1316, %v1320
        %vm1322 = vweird.f32 %v1315
        %vm1323 = vweird.f32 %v1316
        %vm1324 = vmor %vm1322, %vm1323
        %v1325 = vsel %vm1324, %v1316, %v1321
        %v1326 = vmul.f32 %v1312, %v1325
        %v1327 = vld [vmem:[%s5] sm:$0x1]
        %v1329 = vperm.slane %v1327, 0
        %v1331 = vmul.f32 %v1326, %v1329
        %v1332 = vld [vmem:[%s6] sm:$0x1]
        %v1334 = vperm.slane %v1332, 0
        %v1336 = vadd.f32 %v1331, %v1334
        %1337 = vst [vmem:[%s361] sm:$0xff] %v1336
        %s1338 = sand.u32 %s186, 1
        %s1339 = scalar_lea.sflag [#allocation4], %s1338
        %s1340 = sand.u32 %s186, 1
        %s1341 = smul.addr %s1340, 8
        %s1342 = scalar_lea.vmem [#allocation11], %s1341
        // Predicated region
        $region69: #{tpu_custom_call.1} parent=47 // pred_check
          %p1343 = pneg %p196
        $region70: #{tpu_custom_call.1} parent=47 // pred_check_branch
          %1345 = sbr.rel (%p1343) target = $region72
        $region71: #{tpu_custom_call.1} parent=47 // pred_region
          %1347 = vsyncadd %s1339, 0
          %s1348 = smul.addr %s26, 8
          %s1349 = scalar_lea.hbm %s7, %s1348
          %s1351 = sshll.u32 %s1342, 4
          %s1352 = int_to_ptr.vmem [resolvable:$true] %s1351
          %s1353 = sshll.u32 %s1349, 4
          %s1354 = int_to_ptr.hbm [resolvable:$true] %s1353
          %1356 = dma.vmem_to_hbm [thread:$0]  %s1352, 128, %s1354, %s1339
        $region72: #{tpu_custom_call.1} parent=47 // pred_fallthru
          _
      $region48: #{tpu_custom_call.1} parent=5 // pred_fallthru
        _
      %p1357 = scmp.le.s32.totalorder 2, %s21
      // Predicated region
      $region73: #{tpu_custom_call.1} parent=5 // pred_check
        %p1358 = pneg %p1357
      $region74: #{tpu_custom_call.1} parent=5 // pred_check_branch
        %1360 = sbr.rel (%p1358) target = $region76
      $region75: #{tpu_custom_call.1} parent=5 // pred_region
        %s1361 = ssub.s32 %s21, 2
        // Predicated region
        $region77: #{tpu_custom_call.1} parent=75 // pred_check
          %p1362 = pneg %p202
        $region78: #{tpu_custom_call.1} parent=75 // pred_check_branch
          %1364 = sbr.rel (%p1362) target = $region80
        $region79: #{tpu_custom_call.1} parent=75 // pred_region
          %s1365 = sand.u32 %s187, 1
          %s1366 = scalar_lea.sflag [#allocation4], %s1365
          %s1367 = sand.u32 %s187, 1
          %s1368 = smul.addr %s1367, 8
          %s1369 = scalar_lea.vmem [#allocation11], %s1368
          %1371 = dma.done %s1366, 128
        $region80: #{tpu_custom_call.1} parent=75 // pred_fallthru
          _
      $region76: #{tpu_custom_call.1} parent=5 // pred_fallthru
        _
    $region6: #{tpu_custom_call.1} parent=1 // loop_footer
      %s25 = sadd.s32 1, %s21
    $region7: #{tpu_custom_call.1} parent=1 // loop_footer_branch
      %20 = sbr.rel target = $region3
    $region8: #{tpu_custom_call.1} parent=1 // loop_exit
      _
    %1372 = vsyncpa [#allocation3], 1
    %s1373 = scalar_lea.sflag [#allocation3], 1
    %1374 = vsyncpa %s1373, 1
    %1375 = vsyncpa [#allocation6], 1
    %1376 = vsyncpa [#allocation9], 1
    %1377 = vsyncpa [#allocation4], 1
    %s1378 = scalar_lea.sflag [#allocation4], 1
    %1379 = vsyncpa %s1378, 1

</llo_original>
